<compile_context>
chip_gen: v5e
topology: v5e:2x2
jax: 0.10.0
libtpu: 0.0.40
codegen_flags: <defaults>
</compile_context>

<pallas_src>
import functools

import jax
import jax.numpy as jnp
from jax.experimental import pallas as pl
from jax.experimental.pallas import tpu as pltpu

_UNROLL_T = 16  # fully unroll the time loop up to this many steps


def _round_up(x, m):
    return (x + m - 1) // m * m


def _multi_gru_kernel(T, Bp, P,
                      x_ref, w_ih_ref, w_hh_ref, b_gi_ref, b_hn_ref,
                      w_lin_ref, b_lin_ref, out_ref, gi_ref, act_ref):
    """One grid step == one GRU layer.

    Per-layer (block index = layer):
      w_ih_ref: (P, 3P)   input->gates weights (pre-transposed, zero-padded)
      w_hh_ref: (P, 3P)   hidden->gates weights
      b_gi_ref: (1, 3P)   b_ih (all gates) + b_hh (r,z gates), pre-folded
      b_hn_ref: (Bp, P)   b_hh for the n gate, pre-broadcast over batch
    Resident across the layer axis (constant block index):
      x_ref:    (T*Bp, P)  padded input, flattened over (time, batch)
      w_lin_ref:(P, Dp)    final Linear weight (pre-transposed, zero-padded)
      b_lin_ref:(1, Dp)
      out_ref:  (T*Bp, Dp) written only at the last layer (epilogue)
      gi_ref:   VMEM scratch (T*Bp, 3P) hoisted input-path gate pre-activations
      act_ref:  VMEM scratch (T*Bp, P)  current layer's output sequence
    """
    l = pl.program_id(0)

    # Layer 0: seed the activation scratch with the (padded) input sequence.
    @pl.when(l == 0)
    def _():
        act_ref[...] = x_ref[...]

    # ---- hoisted, well-shaped MXU matmul over the whole sequence ----
    w_ih = w_ih_ref[...]                                   # (P, 3P)
    gi_ref[...] = (
        jnp.dot(act_ref[...], w_ih, preferred_element_type=jnp.float32)
        + b_gi_ref[...]
    )

    w_hh = w_hh_ref[...]                                   # (P, 3P)
    b_hn = b_hn_ref[...]                                   # (Bp, P), no per-step broadcast

    # ---- sequential recurrence: only the h-path matmul + gate math ----
    def step(t, h):
        if isinstance(t, int):
            r0 = t * Bp
        else:
            r0 = pl.multiple_of(t * Bp, Bp)
        gi = gi_ref[pl.ds(r0, Bp), :]                      # (Bp, 3P)
        gh = jnp.dot(h, w_hh, preferred_element_type=jnp.float32)
        # Fused r/z sigmoid over a 2-gate (Bp, 2P) slab; lane-aligned slices.
        rz = jax.nn.sigmoid(gi[:, :2 * P] + gh[:, :2 * P])
        r = rz[:, :P]
        z = rz[:, P:]
        n = jnp.tanh(gi[:, 2 * P:] + r * (gh[:, 2 * P:] + b_hn))
        h_new = (1.0 - z) * n + z * h
        act_ref[pl.ds(r0, Bp), :] = h_new
        return h_new

    h0 = jnp.zeros((Bp, P), jnp.float32)
    if T <= _UNROLL_T:
        h = h0
        for t in range(T):
            h = step(t, h)
    else:
        jax.lax.fori_loop(0, T, step, h0, unroll=2)

    # ---- epilogue: final Linear as one lane-dense (T*Bp, Dp) slab ----
    @pl.when(l == pl.num_programs(0) - 1)
    def _():
        out_ref[...] = (
            jnp.dot(act_ref[...], w_lin_ref[...],
                    preferred_element_type=jnp.float32)
            + b_lin_ref[...]
        )


def multi_gru_forward(data, params, *, num_layers, hidden_dim):
    """data: (T, B, D) float32.  params: dict of per-layer GRU + linear weights."""
    T, B, D = data.shape
    H = hidden_dim
    L = num_layers

    Bp = _round_up(B, 8)             # f32 sublane minimum
    P = _round_up(max(D, H), 128)    # shared lane-padded input/hidden width
    Dp = _round_up(D, 128)           # lane-padded output width

    # ---- host-side padding & bias pre-folding (outside the hot kernel) ----
    x_p = jnp.zeros((T, Bp, P), jnp.float32).at[:, :B, :D].set(data)
    x_p = x_p.reshape(T * Bp, P)

    w_ih_all = jnp.zeros((L, P, 3 * P), jnp.float32)
    w_hh_all = jnp.zeros((L, P, 3 * P), jnp.float32)
    b_gi_all = jnp.zeros((L, 1, 3 * P), jnp.float32)
    b_hn_all = jnp.zeros((L, Bp, P), jnp.float32)   # pre-broadcast over batch rows
    for l in range(L):
        d_in = D if l == 0 else H
        w_ih = params[f"w_ih_l{l}"]          # (d_in, 3H), gate order r|z|n
        w_hh = params[f"w_hh_l{l}"]          # (H, 3H)
        b_ih = params[f"b_ih_l{l}"]          # (1, 3H)
        b_hh = params[f"b_hh_l{l}"]          # (1, 3H)
        for g in range(3):
            w_ih_all = w_ih_all.at[l, :d_in, g * P:g * P + H].set(
                w_ih[:, g * H:(g + 1) * H])
            w_hh_all = w_hh_all.at[l, :H, g * P:g * P + H].set(
                w_hh[:, g * H:(g + 1) * H])
        # Fold b_ih (all gates) + b_hh (r, z) into the hoisted GI term;
        # b_hh_n stays separate because it sits inside r * (h_n + b_hh_n).
        b_gi_all = b_gi_all.at[l, 0, 0 * P:0 * P + H].set(b_ih[0, 0:H] + b_hh[0, 0:H])
        b_gi_all = b_gi_all.at[l, 0, 1 * P:1 * P + H].set(b_ih[0, H:2 * H] + b_hh[0, H:2 * H])
        b_gi_all = b_gi_all.at[l, 0, 2 * P:2 * P + H].set(b_ih[0, 2 * H:3 * H])
        b_hn_all = b_hn_all.at[l, :, :H].set(
            jnp.broadcast_to(b_hh[0, 2 * H:3 * H], (Bp, H)))

    w_lin_p = jnp.zeros((P, Dp), jnp.float32).at[:H, :D].set(params["w_lin"])
    b_lin_p = jnp.zeros((1, Dp), jnp.float32).at[:, :D].set(params["b_lin"])

    kernel = functools.partial(_multi_gru_kernel, T, Bp, P)

    def resident(shape):
        # Same block index for every layer -> fetched once, stays in VMEM.
        return pl.BlockSpec(shape, lambda l: (0,) * len(shape))

    def per_layer(shape):
        # Leading (layer) dim squeezed; block index follows the layer axis.
        return pl.BlockSpec((None,) + shape, lambda l: (l,) + (0,) * len(shape))

    # Rough VMEM budget (f32): resident x/out/scratch + 2x double-buffered
    # per-layer weights + linear weights.  Headroom x2, capped at 100 MiB.
    vmem_est = 4 * (
        T * Bp * P                    # x (resident)
        + T * Bp * Dp                 # out (resident)
        + T * Bp * 3 * P              # gi scratch
        + T * Bp * P                  # act scratch
        + 2 * 2 * (P * 3 * P)         # w_ih + w_hh, double-buffered
        + 2 * (3 * P + Bp * P)        # per-layer biases, double-buffered
        + P * Dp + Dp                 # linear weights
    )
    vmem_limit = min(100 * 1024 * 1024, max(32 * 1024 * 1024, 2 * vmem_est))

    out_flat = pl.pallas_call(
        kernel,
        out_shape=jax.ShapeDtypeStruct((T * Bp, Dp), jnp.float32),
        grid_spec=pltpu.PrefetchScalarGridSpec(
            num_scalar_prefetch=0,
            grid=(L,),
            in_specs=[
                resident((T * Bp, P)),       # x (fetched once)
                per_layer((P, 3 * P)),       # w_ih  (streamed per layer)
                per_layer((P, 3 * P)),       # w_hh  (streamed per layer)
                per_layer((1, 3 * P)),       # folded gi biases
                per_layer((Bp, P)),          # b_hh_n, pre-broadcast
                resident((P, Dp)),           # w_lin
                resident((1, Dp)),           # b_lin
            ],
            out_specs=resident((T * Bp, Dp)),
            scratch_shapes=[
                pltpu.VMEM((T * Bp, 3 * P), jnp.float32),   # hoisted GI
                pltpu.VMEM((T * Bp, P), jnp.float32),       # layer activations
            ],
        ),
        compiler_params=pltpu.CompilerParams(
            dimension_semantics=("arbitrary",),   # layers are sequentially dependent
            vmem_limit_bytes=int(vmem_limit),
        ),
    )(x_p, w_ih_all, w_hh_all, b_gi_all, b_hn_all, w_lin_p, b_lin_p)

    # Strip batch / lane padding.
    return out_flat.reshape(T, Bp, Dp)[:, :B, :D]


def init_params(key, input_dim, hidden_dim, num_layers):
    """Deterministic synthetic weights (uniform, like PyTorch's GRU init range)."""
    H = hidden_dim
    bound = 1.0 / jnp.sqrt(H)
    params = {}
    for l in range(num_layers):
        d_in = input_dim if l == 0 else hidden_dim
        key, k1, k2, k3, k4 = jax.random.split(key, 5)
        # Stored pre-transposed: (in_features, 3H), gate order r|z|n (PyTorch).
        params[f"w_ih_l{l}"] = jax.random.uniform(k1, (d_in, 3 * H), jnp.float32, -bound, bound)
        params[f"w_hh_l{l}"] = jax.random.uniform(k2, (H, 3 * H), jnp.float32, -bound, bound)
        params[f"b_ih_l{l}"] = jax.random.uniform(k3, (1, 3 * H), jnp.float32, -bound, bound)
        params[f"b_hh_l{l}"] = jax.random.uniform(k4, (1, 3 * H), jnp.float32, -bound, bound)
    key, k1, k2 = jax.random.split(key, 3)
    lin_bound = 1.0 / jnp.sqrt(H)
    params["w_lin"] = jax.random.uniform(k1, (H, input_dim), jnp.float32, -lin_bound, lin_bound)
    params["b_lin"] = jax.random.uniform(k2, (1, input_dim), jnp.float32, -lin_bound, lin_bound)
    return params


def reference_forward(data, params, *, num_layers, hidden_dim):
    """Pure-JAX reference (lax.scan) matching torch.nn.GRU + Linear semantics."""
    H = hidden_dim
    T, B, D = data.shape
    layer_in = data
    for l in range(num_layers):
        w_ih = params[f"w_ih_l{l}"]
        w_hh = params[f"w_hh_l{l}"]
        b_ih = params[f"b_ih_l{l}"][0]
        b_hh = params[f"b_hh_l{l}"][0]

        def step(h, x_t):
            gi = x_t @ w_ih + b_ih
            gh = h @ w_hh + b_hh
            i_r, i_z, i_n = gi[:, :H], gi[:, H:2 * H], gi[:, 2 * H:]
            h_r, h_z, h_n = gh[:, :H], gh[:, H:2 * H], gh[:, 2 * H:]
            r = jax.nn.sigmoid(i_r + h_r)
            z = jax.nn.sigmoid(i_z + h_z)
            n = jnp.tanh(i_n + r * h_n)
            h_new = (1.0 - z) * n + z * h
            return h_new, h_new

        h0 = jnp.zeros((B, H), jnp.float32)
        _, outs = jax.lax.scan(step, h0, layer_in)
        layer_in = outs
    return layer_in @ params["w_lin"] + params["b_lin"][0]


if __name__ == "__main__":
    # Module: MultiGRU(input_dim, hidden_dim, num_layers, batch_size)
    input_dim = 16
    hidden_dim = 32
    num_layers = 2
    seq_len = 8
    batch = 2

    key = jax.random.PRNGKey(0)
    key, kx = jax.random.split(key)
    data = jax.random.normal(kx, (seq_len, batch, input_dim), jnp.float32)
    params = init_params(key, input_dim, hidden_dim, num_layers)

    out = multi_gru_forward(data, params, num_layers=num_layers, hidden_dim=hidden_dim)
    out = jax.block_until_ready(out)

    ref = reference_forward(data, params, num_layers=num_layers, hidden_dim=hidden_dim)
    assert out.shape == (seq_len, batch, input_dim)
    assert jnp.allclose(out, ref, atol=2e-5, rtol=2e-5), "mismatch vs JAX reference"

    print("KERNEL_OK")
</pallas_src>

<mosaic_0001>
module attributes {stable_mosaic.version = 11 : i64} {
  func.func @_multi_gru_kernel(%arg0: i32, %arg1: memref<64x128xf32, #tpu.memory_space<vmem>>, %arg2: memref<1x128x384xf32, #tpu.memory_space<vmem>>, %arg3: memref<1x128x384xf32, #tpu.memory_space<vmem>>, %arg4: memref<1x1x384xf32, #tpu.memory_space<vmem>>, %arg5: memref<1x8x128xf32, #tpu.memory_space<vmem>>, %arg6: memref<128x128xf32, #tpu.memory_space<vmem>>, %arg7: memref<1x128xf32, #tpu.memory_space<vmem>>, %arg8: memref<64x128xf32, #tpu.memory_space<vmem>>, %arg9: memref<64x384xf32, #tpu.memory_space<vmem>>, %arg10: memref<64x128xf32, #tpu.memory_space<vmem>>) attributes {dimension_semantics = [#tpu.dimension_semantics<arbitrary>], iteration_bounds = array<i64: 2>, scalar_prefetch = 0 : i64, scratch_operands = 2 : i64, tpu.core_type = #tpu.core_type<tc>, window_params = [{pipeline_mode = #tpu.pipeline_mode<synchronous>, transform_indices = @transform_0, window_bounds = array<i64: 64, 128>}, {transform_indices = @transform_1, window_bounds = array<i64: 1, 128, 384>}, {transform_indices = @transform_2, window_bounds = array<i64: 1, 128, 384>}, {transform_indices = @transform_3, window_bounds = array<i64: 1, 1, 384>}, {transform_indices = @transform_4, window_bounds = array<i64: 1, 8, 128>}, {pipeline_mode = #tpu.pipeline_mode<synchronous>, transform_indices = @transform_5, window_bounds = array<i64: 128, 128>}, {pipeline_mode = #tpu.pipeline_mode<synchronous>, transform_indices = @transform_6, window_bounds = array<i64: 1, 128>}, {pipeline_mode = #tpu.pipeline_mode<synchronous>, transform_indices = @transform_7, window_bounds = array<i64: 64, 128>}]} {
    %c0_i32 = arith.constant 0 : i32
    %0 = arith.cmpi eq, %arg0, %c0_i32 : i32
    %1 = arith.extui %0 : i1 to i32
    %c0_i32_0 = arith.constant 0 : i32
    %2 = arith.cmpi ne, %1, %c0_i32_0 : i32
    scf.if %2 {
      %c0_67 = arith.constant 0 : index
      %c0_68 = arith.constant 0 : index
      %212 = vector.load %arg1[%c0_67, %c0_68] : memref<64x128xf32, #tpu.memory_space<vmem>>, vector<64x128xf32>
      %c0_69 = arith.constant 0 : index
      %c0_70 = arith.constant 0 : index
      %213 = vector.load %arg10[%c0_69, %c0_70] : memref<64x128xf32, #tpu.memory_space<vmem>>, vector<64x128xf32>
      tpu.vector_store %arg10[%c0_69, %c0_70], %212 {strides = array<i32>} : memref<64x128xf32, #tpu.memory_space<vmem>>, vector<64x128xf32>,
    } else {
    }
    %c0 = arith.constant 0 : index
    %c0_1 = arith.constant 0 : index
    %c0_2 = arith.constant 0 : index
    %3 = vector.load %arg2[%c0, %c0_1, %c0_2] : memref<1x128x384xf32, #tpu.memory_space<vmem>>, vector<1x128x384xf32>
    %4 = vector.shape_cast %3 : vector<1x128x384xf32> to vector<128x384xf32>
    %c0_3 = arith.constant 0 : index
    %c0_4 = arith.constant 0 : index
    %5 = vector.load %arg10[%c0_3, %c0_4] : memref<64x128xf32, #tpu.memory_space<vmem>>, vector<64x128xf32>
    %cst = arith.constant dense<0.000000e+00> : vector<64x384xf32>
    %6 = tpu.matmul %5, %4, %cst {dimension_numbers = #tpu.dot_dimension_numbers<[1], [0], [0], [1], [0, 0, 1, 1], [], []>} : vector<64x128xf32>, vector<128x384xf32>, vector<64x384xf32> -> vector<64x384xf32>
    %c0_5 = arith.constant 0 : index
    %c0_6 = arith.constant 0 : index
    %c0_7 = arith.constant 0 : index
    %7 = vector.load %arg4[%c0_5, %c0_6, %c0_7] : memref<1x1x384xf32, #tpu.memory_space<vmem>>, vector<1x1x384xf32>
    %8 = vector.shape_cast %7 : vector<1x1x384xf32> to vector<1x384xf32>
    %9 = vector.broadcast %8 : vector<1x384xf32> to vector<64x384xf32>
    %10 = arith.addf %6, %9 : vector<64x384xf32>
    %c0_8 = arith.constant 0 : index
    %c0_9 = arith.constant 0 : index
    %11 = vector.load %arg9[%c0_8, %c0_9] : memref<64x384xf32, #tpu.memory_space<vmem>>, vector<64x384xf32>
    tpu.vector_store %arg9[%c0_8, %c0_9], %10 {strides = array<i32>} : memref<64x384xf32, #tpu.memory_space<vmem>>, vector<64x384xf32>,
    %c0_10 = arith.constant 0 : index
    %c0_11 = arith.constant 0 : index
    %c0_12 = arith.constant 0 : index
    %12 = vector.load %arg3[%c0_10, %c0_11, %c0_12] : memref<1x128x384xf32, #tpu.memory_space<vmem>>, vector<1x128x384xf32>
    %13 = vector.shape_cast %12 : vector<1x128x384xf32> to vector<128x384xf32>
    %c0_13 = arith.constant 0 : index
    %c0_14 = arith.constant 0 : index
    %c0_15 = arith.constant 0 : index
    %14 = vector.load %arg5[%c0_13, %c0_14, %c0_15] : memref<1x8x128xf32, #tpu.memory_space<vmem>>, vector<1x8x128xf32>
    %15 = vector.shape_cast %14 : vector<1x8x128xf32> to vector<8x128xf32>
    %cst_16 = arith.constant 0.000000e+00 : f32
    %16 = vector.broadcast %cst_16 : f32 to vector<8x128xf32>
    %c0_17 = arith.constant 0 : index
    %c0_18 = arith.constant 0 : index
    %17 = vector.load %arg9[%c0_17, %c0_18] : memref<64x384xf32, #tpu.memory_space<vmem>>, vector<8x384xf32>
    %cst_19 = arith.constant dense<0.000000e+00> : vector<8x384xf32>
    %18 = tpu.matmul %16, %13, %cst_19 {dimension_numbers = #tpu.dot_dimension_numbers<[1], [0], [0], [1], [0, 0, 1, 1], [], []>} : vector<8x128xf32>, vector<128x384xf32>, vector<8x384xf32> -> vector<8x384xf32>
    %19 = vector.extract_strided_slice %17 {offsets = [0, 0], sizes = [8, 256], strides = [1, 1]} : vector<8x384xf32> to vector<8x256xf32>
    %20 = vector.extract_strided_slice %18 {offsets = [0, 0], sizes = [8, 256], strides = [1, 1]} : vector<8x384xf32> to vector<8x256xf32>
    %21 = arith.addf %19, %20 : vector<8x256xf32>
    %22 = arith.negf %21 : vector<8x256xf32>
    %23 = math.exp %22 : vector<8x256xf32>
    %cst_20 = arith.constant 1.000000e+00 : f32
    %24 = vector.broadcast %cst_20 : f32 to vector<8x256xf32>
    %25 = arith.addf %24, %23 : vector<8x256xf32>
    %26 = arith.divf %24, %25 : vector<8x256xf32>
    %27 = vector.extract_strided_slice %26 {offsets = [0, 0], sizes = [8, 128], strides = [1, 1]} : vector<8x256xf32> to vector<8x128xf32>
    %28 = vector.extract_strided_slice %26 {offsets = [0, 128], sizes = [8, 128], strides = [1, 1]} : vector<8x256xf32> to vector<8x128xf32>
    %29 = vector.extract_strided_slice %17 {offsets = [0, 256], sizes = [8, 128], strides = [1, 1]} : vector<8x384xf32> to vector<8x128xf32>
    %30 = vector.extract_strided_slice %18 {offsets = [0, 256], sizes = [8, 128], strides = [1, 1]} : vector<8x384xf32> to vector<8x128xf32>
    %31 = arith.addf %30, %15 : vector<8x128xf32>
    %32 = arith.mulf %27, %31 : vector<8x128xf32>
    %33 = arith.addf %29, %32 : vector<8x128xf32>
    %34 = math.tanh %33 : vector<8x128xf32>
    %cst_21 = arith.constant 1.000000e+00 : f32
    %35 = vector.broadcast %cst_21 : f32 to vector<8x128xf32>
    %36 = arith.subf %35, %28 : vector<8x128xf32>
    %37 = arith.mulf %36, %34 : vector<8x128xf32>
    %38 = arith.mulf %28, %16 : vector<8x128xf32>
    %39 = arith.addf %37, %38 : vector<8x128xf32>
    %c0_22 = arith.constant 0 : index
    %c0_23 = arith.constant 0 : index
    %40 = vector.load %arg10[%c0_22, %c0_23] : memref<64x128xf32, #tpu.memory_space<vmem>>, vector<8x128xf32>
    tpu.vector_store %arg10[%c0_22, %c0_23], %39 {strides = array<i32>} : memref<64x128xf32, #tpu.memory_space<vmem>>, vector<8x128xf32>,
    %c8 = arith.constant 8 : index
    %c0_24 = arith.constant 0 : index
    %41 = vector.load %arg9[%c8, %c0_24] : memref<64x384xf32, #tpu.memory_space<vmem>>, vector<8x384xf32>
    %cst_25 = arith.constant dense<0.000000e+00> : vector<8x384xf32>
    %42 = tpu.matmul %39, %13, %cst_25 {dimension_numbers = #tpu.dot_dimension_numbers<[1], [0], [0], [1], [0, 0, 1, 1], [], []>} : vector<8x128xf32>, vector<128x384xf32>, vector<8x384xf32> -> vector<8x384xf32>
    %43 = vector.extract_strided_slice %41 {offsets = [0, 0], sizes = [8, 256], strides = [1, 1]} : vector<8x384xf32> to vector<8x256xf32>
    %44 = vector.extract_strided_slice %42 {offsets = [0, 0], sizes = [8, 256], strides = [1, 1]} : vector<8x384xf32> to vector<8x256xf32>
    %45 = arith.addf %43, %44 : vector<8x256xf32>
    %46 = arith.negf %45 : vector<8x256xf32>
    %47 = math.exp %46 : vector<8x256xf32>
    %cst_26 = arith.constant 1.000000e+00 : f32
    %48 = vector.broadcast %cst_26 : f32 to vector<8x256xf32>
    %49 = arith.addf %48, %47 : vector<8x256xf32>
    %50 = arith.divf %48, %49 : vector<8x256xf32>
    %51 = vector.extract_strided_slice %50 {offsets = [0, 0], sizes = [8, 128], strides = [1, 1]} : vector<8x256xf32> to vector<8x128xf32>
    %52 = vector.extract_strided_slice %50 {offsets = [0, 128], sizes = [8, 128], strides = [1, 1]} : vector<8x256xf32> to vector<8x128xf32>
    %53 = vector.extract_strided_slice %41 {offsets = [0, 256], sizes = [8, 128], strides = [1, 1]} : vector<8x384xf32> to vector<8x128xf32>
    %54 = vector.extract_strided_slice %42 {offsets = [0, 256], sizes = [8, 128], strides = [1, 1]} : vector<8x384xf32> to vector<8x128xf32>
    %55 = arith.addf %54, %15 : vector<8x128xf32>
    %56 = arith.mulf %51, %55 : vector<8x128xf32>
    %57 = arith.addf %53, %56 : vector<8x128xf32>
    %58 = math.tanh %57 : vector<8x128xf32>
    %cst_27 = arith.constant 1.000000e+00 : f32
    %59 = vector.broadcast %cst_27 : f32 to vector<8x128xf32>
    %60 = arith.subf %59, %52 : vector<8x128xf32>
    %61 = arith.mulf %60, %58 : vector<8x128xf32>
    %62 = arith.mulf %52, %39 : vector<8x128xf32>
    %63 = arith.addf %61, %62 : vector<8x128xf32>
    %c8_28 = arith.constant 8 : index
    %c0_29 = arith.constant 0 : index
    %64 = vector.load %arg10[%c8_28, %c0_29] : memref<64x128xf32, #tpu.memory_space<vmem>>, vector<8x128xf32>
    tpu.vector_store %arg10[%c8_28, %c0_29], %63 {strides = array<i32>} : memref<64x128xf32, #tpu.memory_space<vmem>>, vector<8x128xf32>,
    %c16 = arith.constant 16 : index
    %c0_30 = arith.constant 0 : index
    %65 = vector.load %arg9[%c16, %c0_30] : memref<64x384xf32, #tpu.memory_space<vmem>>, vector<8x384xf32>
    %cst_31 = arith.constant dense<0.000000e+00> : vector<8x384xf32>
    %66 = tpu.matmul %63, %13, %cst_31 {dimension_numbers = #tpu.dot_dimension_numbers<[1], [0], [0], [1], [0, 0, 1, 1], [], []>} : vector<8x128xf32>, vector<128x384xf32>, vector<8x384xf32> -> vector<8x384xf32>
    %67 = vector.extract_strided_slice %65 {offsets = [0, 0], sizes = [8, 256], strides = [1, 1]} : vector<8x384xf32> to vector<8x256xf32>
    %68 = vector.extract_strided_slice %66 {offsets = [0, 0], sizes = [8, 256], strides = [1, 1]} : vector<8x384xf32> to vector<8x256xf32>
    %69 = arith.addf %67, %68 : vector<8x256xf32>
    %70 = arith.negf %69 : vector<8x256xf32>
    %71 = math.exp %70 : vector<8x256xf32>
    %cst_32 = arith.constant 1.000000e+00 : f32
    %72 = vector.broadcast %cst_32 : f32 to vector<8x256xf32>
    %73 = arith.addf %72, %71 : vector<8x256xf32>
    %74 = arith.divf %72, %73 : vector<8x256xf32>
    %75 = vector.extract_strided_slice %74 {offsets = [0, 0], sizes = [8, 128], strides = [1, 1]} : vector<8x256xf32> to vector<8x128xf32>
    %76 = vector.extract_strided_slice %74 {offsets = [0, 128], sizes = [8, 128], strides = [1, 1]} : vector<8x256xf32> to vector<8x128xf32>
    %77 = vector.extract_strided_slice %65 {offsets = [0, 256], sizes = [8, 128], strides = [1, 1]} : vector<8x384xf32> to vector<8x128xf32>
    %78 = vector.extract_strided_slice %66 {offsets = [0, 256], sizes = [8, 128], strides = [1, 1]} : vector<8x384xf32> to vector<8x128xf32>
    %79 = arith.addf %78, %15 : vector<8x128xf32>
    %80 = arith.mulf %75, %79 : vector<8x128xf32>
    %81 = arith.addf %77, %80 : vector<8x128xf32>
    %82 = math.tanh %81 : vector<8x128xf32>
    %cst_33 = arith.constant 1.000000e+00 : f32
    %83 = vector.broadcast %cst_33 : f32 to vector<8x128xf32>
    %84 = arith.subf %83, %76 : vector<8x128xf32>
    %85 = arith.mulf %84, %82 : vector<8x128xf32>
    %86 = arith.mulf %76, %63 : vector<8x128xf32>
    %87 = arith.addf %85, %86 : vector<8x128xf32>
    %c16_34 = arith.constant 16 : index
    %c0_35 = arith.constant 0 : index
    %88 = vector.load %arg10[%c16_34, %c0_35] : memref<64x128xf32, #tpu.memory_space<vmem>>, vector<8x128xf32>
    tpu.vector_store %arg10[%c16_34, %c0_35], %87 {strides = array<i32>} : memref<64x128xf32, #tpu.memory_space<vmem>>, vector<8x128xf32>,
    %c24 = arith.constant 24 : index
    %c0_36 = arith.constant 0 : index
    %89 = vector.load %arg9[%c24, %c0_36] : memref<64x384xf32, #tpu.memory_space<vmem>>, vector<8x384xf32>
    %cst_37 = arith.constant dense<0.000000e+00> : vector<8x384xf32>
    %90 = tpu.matmul %87, %13, %cst_37 {dimension_numbers = #tpu.dot_dimension_numbers<[1], [0], [0], [1], [0, 0, 1, 1], [], []>} : vector<8x128xf32>, vector<128x384xf32>, vector<8x384xf32> -> vector<8x384xf32>
    %91 = vector.extract_strided_slice %89 {offsets = [0, 0], sizes = [8, 256], strides = [1, 1]} : vector<8x384xf32> to vector<8x256xf32>
    %92 = vector.extract_strided_slice %90 {offsets = [0, 0], sizes = [8, 256], strides = [1, 1]} : vector<8x384xf32> to vector<8x256xf32>
    %93 = arith.addf %91, %92 : vector<8x256xf32>
    %94 = arith.negf %93 : vector<8x256xf32>
    %95 = math.exp %94 : vector<8x256xf32>
    %cst_38 = arith.constant 1.000000e+00 : f32
    %96 = vector.broadcast %cst_38 : f32 to vector<8x256xf32>
    %97 = arith.addf %96, %95 : vector<8x256xf32>
    %98 = arith.divf %96, %97 : vector<8x256xf32>
    %99 = vector.extract_strided_slice %98 {offsets = [0, 0], sizes = [8, 128], strides = [1, 1]} : vector<8x256xf32> to vector<8x128xf32>
    %100 = vector.extract_strided_slice %98 {offsets = [0, 128], sizes = [8, 128], strides = [1, 1]} : vector<8x256xf32> to vector<8x128xf32>
    %101 = vector.extract_strided_slice %89 {offsets = [0, 256], sizes = [8, 128], strides = [1, 1]} : vector<8x384xf32> to vector<8x128xf32>
    %102 = vector.extract_strided_slice %90 {offsets = [0, 256], sizes = [8, 128], strides = [1, 1]} : vector<8x384xf32> to vector<8x128xf32>
    %103 = arith.addf %102, %15 : vector<8x128xf32>
    %104 = arith.mulf %99, %103 : vector<8x128xf32>
    %105 = arith.addf %101, %104 : vector<8x128xf32>
    %106 = math.tanh %105 : vector<8x128xf32>
    %cst_39 = arith.constant 1.000000e+00 : f32
    %107 = vector.broadcast %cst_39 : f32 to vector<8x128xf32>
    %108 = arith.subf %107, %100 : vector<8x128xf32>
    %109 = arith.mulf %108, %106 : vector<8x128xf32>
    %110 = arith.mulf %100, %87 : vector<8x128xf32>
    %111 = arith.addf %109, %110 : vector<8x128xf32>
    %c24_40 = arith.constant 24 : index
    %c0_41 = arith.constant 0 : index
    %112 = vector.load %arg10[%c24_40, %c0_41] : memref<64x128xf32, #tpu.memory_space<vmem>>, vector<8x128xf32>
    tpu.vector_store %arg10[%c24_40, %c0_41], %111 {strides = array<i32>} : memref<64x128xf32, #tpu.memory_space<vmem>>, vector<8x128xf32>,
    %c32 = arith.constant 32 : index
    %c0_42 = arith.constant 0 : index
    %113 = vector.load %arg9[%c32, %c0_42] : memref<64x384xf32, #tpu.memory_space<vmem>>, vector<8x384xf32>
    %cst_43 = arith.constant dense<0.000000e+00> : vector<8x384xf32>
    %114 = tpu.matmul %111, %13, %cst_43 {dimension_numbers = #tpu.dot_dimension_numbers<[1], [0], [0], [1], [0, 0, 1, 1], [], []>} : vector<8x128xf32>, vector<128x384xf32>, vector<8x384xf32> -> vector<8x384xf32>
    %115 = vector.extract_strided_slice %113 {offsets = [0, 0], sizes = [8, 256], strides = [1, 1]} : vector<8x384xf32> to vector<8x256xf32>
    %116 = vector.extract_strided_slice %114 {offsets = [0, 0], sizes = [8, 256], strides = [1, 1]} : vector<8x384xf32> to vector<8x256xf32>
    %117 = arith.addf %115, %116 : vector<8x256xf32>
    %118 = arith.negf %117 : vector<8x256xf32>
    %119 = math.exp %118 : vector<8x256xf32>
    %cst_44 = arith.constant 1.000000e+00 : f32
    %120 = vector.broadcast %cst_44 : f32 to vector<8x256xf32>
    %121 = arith.addf %120, %119 : vector<8x256xf32>
    %122 = arith.divf %120, %121 : vector<8x256xf32>
    %123 = vector.extract_strided_slice %122 {offsets = [0, 0], sizes = [8, 128], strides = [1, 1]} : vector<8x256xf32> to vector<8x128xf32>
    %124 = vector.extract_strided_slice %122 {offsets = [0, 128], sizes = [8, 128], strides = [1, 1]} : vector<8x256xf32> to vector<8x128xf32>
    %125 = vector.extract_strided_slice %113 {offsets = [0, 256], sizes = [8, 128], strides = [1, 1]} : vector<8x384xf32> to vector<8x128xf32>
    %126 = vector.extract_strided_slice %114 {offsets = [0, 256], sizes = [8, 128], strides = [1, 1]} : vector<8x384xf32> to vector<8x128xf32>
    %127 = arith.addf %126, %15 : vector<8x128xf32>
    %128 = arith.mulf %123, %127 : vector<8x128xf32>
    %129 = arith.addf %125, %128 : vector<8x128xf32>
    %130 = math.tanh %129 : vector<8x128xf32>
    %cst_45 = arith.constant 1.000000e+00 : f32
    %131 = vector.broadcast %cst_45 : f32 to vector<8x128xf32>
    %132 = arith.subf %131, %124 : vector<8x128xf32>
    %133 = arith.mulf %132, %130 : vector<8x128xf32>
    %134 = arith.mulf %124, %111 : vector<8x128xf32>
    %135 = arith.addf %133, %134 : vector<8x128xf32>
    %c32_46 = arith.constant 32 : index
    %c0_47 = arith.constant 0 : index
    %136 = vector.load %arg10[%c32_46, %c0_47] : memref<64x128xf32, #tpu.memory_space<vmem>>, vector<8x128xf32>
    tpu.vector_store %arg10[%c32_46, %c0_47], %135 {strides = array<i32>} : memref<64x128xf32, #tpu.memory_space<vmem>>, vector<8x128xf32>,
    %c40 = arith.constant 40 : index
    %c0_48 = arith.constant 0 : index
    %137 = vector.load %arg9[%c40, %c0_48] : memref<64x384xf32, #tpu.memory_space<vmem>>, vector<8x384xf32>
    %cst_49 = arith.constant dense<0.000000e+00> : vector<8x384xf32>
    %138 = tpu.matmul %135, %13, %cst_49 {dimension_numbers = #tpu.dot_dimension_numbers<[1], [0], [0], [1], [0, 0, 1, 1], [], []>} : vector<8x128xf32>, vector<128x384xf32>, vector<8x384xf32> -> vector<8x384xf32>
    %139 = vector.extract_strided_slice %137 {offsets = [0, 0], sizes = [8, 256], strides = [1, 1]} : vector<8x384xf32> to vector<8x256xf32>
    %140 = vector.extract_strided_slice %138 {offsets = [0, 0], sizes = [8, 256], strides = [1, 1]} : vector<8x384xf32> to vector<8x256xf32>
    %141 = arith.addf %139, %140 : vector<8x256xf32>
    %142 = arith.negf %141 : vector<8x256xf32>
    %143 = math.exp %142 : vector<8x256xf32>
    %cst_50 = arith.constant 1.000000e+00 : f32
    %144 = vector.broadcast %cst_50 : f32 to vector<8x256xf32>
    %145 = arith.addf %144, %143 : vector<8x256xf32>
    %146 = arith.divf %144, %145 : vector<8x256xf32>
    %147 = vector.extract_strided_slice %146 {offsets = [0, 0], sizes = [8, 128], strides = [1, 1]} : vector<8x256xf32> to vector<8x128xf32>
    %148 = vector.extract_strided_slice %146 {offsets = [0, 128], sizes = [8, 128], strides = [1, 1]} : vector<8x256xf32> to vector<8x128xf32>
    %149 = vector.extract_strided_slice %137 {offsets = [0, 256], sizes = [8, 128], strides = [1, 1]} : vector<8x384xf32> to vector<8x128xf32>
    %150 = vector.extract_strided_slice %138 {offsets = [0, 256], sizes = [8, 128], strides = [1, 1]} : vector<8x384xf32> to vector<8x128xf32>
    %151 = arith.addf %150, %15 : vector<8x128xf32>
    %152 = arith.mulf %147, %151 : vector<8x128xf32>
    %153 = arith.addf %149, %152 : vector<8x128xf32>
    %154 = math.tanh %153 : vector<8x128xf32>
    %cst_51 = arith.constant 1.000000e+00 : f32
    %155 = vector.broadcast %cst_51 : f32 to vector<8x128xf32>
    %156 = arith.subf %155, %148 : vector<8x128xf32>
    %157 = arith.mulf %156, %154 : vector<8x128xf32>
    %158 = arith.mulf %148, %135 : vector<8x128xf32>
    %159 = arith.addf %157, %158 : vector<8x128xf32>
    %c40_52 = arith.constant 40 : index
    %c0_53 = arith.constant 0 : index
    %160 = vector.load %arg10[%c40_52, %c0_53] : memref<64x128xf32, #tpu.memory_space<vmem>>, vector<8x128xf32>
    tpu.vector_store %arg10[%c40_52, %c0_53], %159 {strides = array<i32>} : memref<64x128xf32, #tpu.memory_space<vmem>>, vector<8x128xf32>,
    %c48 = arith.constant 48 : index
    %c0_54 = arith.constant 0 : index
    %161 = vector.load %arg9[%c48, %c0_54] : memref<64x384xf32, #tpu.memory_space<vmem>>, vector<8x384xf32>
    %cst_55 = arith.constant dense<0.000000e+00> : vector<8x384xf32>
    %162 = tpu.matmul %159, %13, %cst_55 {dimension_numbers = #tpu.dot_dimension_numbers<[1], [0], [0], [1], [0, 0, 1, 1], [], []>} : vector<8x128xf32>, vector<128x384xf32>, vector<8x384xf32> -> vector<8x384xf32>
    %163 = vector.extract_strided_slice %161 {offsets = [0, 0], sizes = [8, 256], strides = [1, 1]} : vector<8x384xf32> to vector<8x256xf32>
    %164 = vector.extract_strided_slice %162 {offsets = [0, 0], sizes = [8, 256], strides = [1, 1]} : vector<8x384xf32> to vector<8x256xf32>
    %165 = arith.addf %163, %164 : vector<8x256xf32>
    %166 = arith.negf %165 : vector<8x256xf32>
    %167 = math.exp %166 : vector<8x256xf32>
    %cst_56 = arith.constant 1.000000e+00 : f32
    %168 = vector.broadcast %cst_56 : f32 to vector<8x256xf32>
    %169 = arith.addf %168, %167 : vector<8x256xf32>
    %170 = arith.divf %168, %169 : vector<8x256xf32>
    %171 = vector.extract_strided_slice %170 {offsets = [0, 0], sizes = [8, 128], strides = [1, 1]} : vector<8x256xf32> to vector<8x128xf32>
    %172 = vector.extract_strided_slice %170 {offsets = [0, 128], sizes = [8, 128], strides = [1, 1]} : vector<8x256xf32> to vector<8x128xf32>
    %173 = vector.extract_strided_slice %161 {offsets = [0, 256], sizes = [8, 128], strides = [1, 1]} : vector<8x384xf32> to vector<8x128xf32>
    %174 = vector.extract_strided_slice %162 {offsets = [0, 256], sizes = [8, 128], strides = [1, 1]} : vector<8x384xf32> to vector<8x128xf32>
    %175 = arith.addf %174, %15 : vector<8x128xf32>
    %176 = arith.mulf %171, %175 : vector<8x128xf32>
    %177 = arith.addf %173, %176 : vector<8x128xf32>
    %178 = math.tanh %177 : vector<8x128xf32>
    %cst_57 = arith.constant 1.000000e+00 : f32
    %179 = vector.broadcast %cst_57 : f32 to vector<8x128xf32>
    %180 = arith.subf %179, %172 : vector<8x128xf32>
    %181 = arith.mulf %180, %178 : vector<8x128xf32>
    %182 = arith.mulf %172, %159 : vector<8x128xf32>
    %183 = arith.addf %181, %182 : vector<8x128xf32>
    %c48_58 = arith.constant 48 : index
    %c0_59 = arith.constant 0 : index
    %184 = vector.load %arg10[%c48_58, %c0_59] : memref<64x128xf32, #tpu.memory_space<vmem>>, vector<8x128xf32>
    tpu.vector_store %arg10[%c48_58, %c0_59], %183 {strides = array<i32>} : memref<64x128xf32, #tpu.memory_space<vmem>>, vector<8x128xf32>,
    %c56 = arith.constant 56 : index
    %c0_60 = arith.constant 0 : index
    %185 = vector.load %arg9[%c56, %c0_60] : memref<64x384xf32, #tpu.memory_space<vmem>>, vector<8x384xf32>
    %cst_61 = arith.constant dense<0.000000e+00> : vector<8x384xf32>
    %186 = tpu.matmul %183, %13, %cst_61 {dimension_numbers = #tpu.dot_dimension_numbers<[1], [0], [0], [1], [0, 0, 1, 1], [], []>} : vector<8x128xf32>, vector<128x384xf32>, vector<8x384xf32> -> vector<8x384xf32>
    %187 = vector.extract_strided_slice %185 {offsets = [0, 0], sizes = [8, 256], strides = [1, 1]} : vector<8x384xf32> to vector<8x256xf32>
    %188 = vector.extract_strided_slice %186 {offsets = [0, 0], sizes = [8, 256], strides = [1, 1]} : vector<8x384xf32> to vector<8x256xf32>
    %189 = arith.addf %187, %188 : vector<8x256xf32>
    %190 = arith.negf %189 : vector<8x256xf32>
    %191 = math.exp %190 : vector<8x256xf32>
    %cst_62 = arith.constant 1.000000e+00 : f32
    %192 = vector.broadcast %cst_62 : f32 to vector<8x256xf32>
    %193 = arith.addf %192, %191 : vector<8x256xf32>
    %194 = arith.divf %192, %193 : vector<8x256xf32>
    %195 = vector.extract_strided_slice %194 {offsets = [0, 0], sizes = [8, 128], strides = [1, 1]} : vector<8x256xf32> to vector<8x128xf32>
    %196 = vector.extract_strided_slice %194 {offsets = [0, 128], sizes = [8, 128], strides = [1, 1]} : vector<8x256xf32> to vector<8x128xf32>
    %197 = vector.extract_strided_slice %185 {offsets = [0, 256], sizes = [8, 128], strides = [1, 1]} : vector<8x384xf32> to vector<8x128xf32>
    %198 = vector.extract_strided_slice %186 {offsets = [0, 256], sizes = [8, 128], strides = [1, 1]} : vector<8x384xf32> to vector<8x128xf32>
    %199 = arith.addf %198, %15 : vector<8x128xf32>
    %200 = arith.mulf %195, %199 : vector<8x128xf32>
    %201 = arith.addf %197, %200 : vector<8x128xf32>
    %202 = math.tanh %201 : vector<8x128xf32>
    %cst_63 = arith.constant 1.000000e+00 : f32
    %203 = vector.broadcast %cst_63 : f32 to vector<8x128xf32>
    %204 = arith.subf %203, %196 : vector<8x128xf32>
    %205 = arith.mulf %204, %202 : vector<8x128xf32>
    %206 = arith.mulf %196, %183 : vector<8x128xf32>
    %207 = arith.addf %205, %206 : vector<8x128xf32>
    %c56_64 = arith.constant 56 : index
    %c0_65 = arith.constant 0 : index
    %208 = vector.load %arg10[%c56_64, %c0_65] : memref<64x128xf32, #tpu.memory_space<vmem>>, vector<8x128xf32>
    tpu.vector_store %arg10[%c56_64, %c0_65], %207 {strides = array<i32>} : memref<64x128xf32, #tpu.memory_space<vmem>>, vector<8x128xf32>,
    %c1_i32 = arith.constant 1 : i32
    %209 = arith.cmpi eq, %arg0, %c1_i32 : i32
    %210 = arith.extui %209 : i1 to i32
    %c0_i32_66 = arith.constant 0 : i32
    %211 = arith.cmpi ne, %210, %c0_i32_66 : i32
    scf.if %211 {
      %c0_67 = arith.constant 0 : index
      %c0_68 = arith.constant 0 : index
      %212 = vector.load %arg10[%c0_67, %c0_68] : memref<64x128xf32, #tpu.memory_space<vmem>>, vector<64x128xf32>
      %c0_69 = arith.constant 0 : index
      %c0_70 = arith.constant 0 : index
      %213 = vector.load %arg6[%c0_69, %c0_70] : memref<128x128xf32, #tpu.memory_space<vmem>>, vector<128x128xf32>
      %cst_71 = arith.constant dense<0.000000e+00> : vector<64x128xf32>
      %214 = tpu.matmul %212, %213, %cst_71 {dimension_numbers = #tpu.dot_dimension_numbers<[1], [0], [0], [1], [0, 0, 1, 1], [], []>} : vector<64x128xf32>, vector<128x128xf32>, vector<64x128xf32> -> vector<64x128xf32>
      %c0_72 = arith.constant 0 : index
      %c0_73 = arith.constant 0 : index
      %215 = vector.load %arg7[%c0_72, %c0_73] : memref<1x128xf32, #tpu.memory_space<vmem>>, vector<1x128xf32>
      %216 = vector.broadcast %215 : vector<1x128xf32> to vector<64x128xf32>
      %217 = arith.addf %214, %216 : vector<64x128xf32>
      %c0_74 = arith.constant 0 : index
      %c0_75 = arith.constant 0 : index
      %218 = vector.load %arg8[%c0_74, %c0_75] : memref<64x128xf32, #tpu.memory_space<vmem>>, vector<64x128xf32>
      tpu.vector_store %arg8[%c0_74, %c0_75], %217 {strides = array<i32>} : memref<64x128xf32, #tpu.memory_space<vmem>>, vector<64x128xf32>,
    } else {
    }
    return
  }
  func.func @transform_0(%arg0: i32) -> (i32, i32) {
    %c0_i32 = arith.constant 0 : i32
    %c0_i32_0 = arith.constant 0 : i32
    %c0_i32_1 = arith.constant 0 : i32
    return %c0_i32, %c0_i32_0 : i32, i32
  }
  func.func @transform_1(%arg0: i32) -> (i32, i32, i32) {
    %c0_i32 = arith.constant 0 : i32
    %c0_i32_0 = arith.constant 0 : i32
    %c0_i32_1 = arith.constant 0 : i32
    return %arg0, %c0_i32, %c0_i32_0 : i32, i32, i32
  }
  func.func @transform_2(%arg0: i32) -> (i32, i32, i32) {
    %c0_i32 = arith.constant 0 : i32
    %c0_i32_0 = arith.constant 0 : i32
    %c0_i32_1 = arith.constant 0 : i32
    return %arg0, %c0_i32, %c0_i32_0 : i32, i32, i32
  }
  func.func @transform_3(%arg0: i32) -> (i32, i32, i32) {
    %c0_i32 = arith.constant 0 : i32
    %c0_i32_0 = arith.constant 0 : i32
    %c0_i32_1 = arith.constant 0 : i32
    return %arg0, %c0_i32, %c0_i32_0 : i32, i32, i32
  }
  func.func @transform_4(%arg0: i32) -> (i32, i32, i32) {
    %c0_i32 = arith.constant 0 : i32
    %c0_i32_0 = arith.constant 0 : i32
    %c0_i32_1 = arith.constant 0 : i32
    return %arg0, %c0_i32, %c0_i32_0 : i32, i32, i32
  }
  func.func @transform_5(%arg0: i32) -> (i32, i32) {
    %c0_i32 = arith.constant 0 : i32
    %c0_i32_0 = arith.constant 0 : i32
    %c0_i32_1 = arith.constant 0 : i32
    return %c0_i32, %c0_i32_0 : i32, i32
  }
  func.func @transform_6(%arg0: i32) -> (i32, i32) {
    %c0_i32 = arith.constant 0 : i32
    %c0_i32_0 = arith.constant 0 : i32
    %c0_i32_1 = arith.constant 0 : i32
    return %c0_i32, %c0_i32_0 : i32, i32
  }
  func.func @transform_7(%arg0: i32) -> (i32, i32) {
    %c0_i32 = arith.constant 0 : i32
    %c0_i32_0 = arith.constant 0 : i32
    %c0_i32_1 = arith.constant 0 : i32
    return %c0_i32, %c0_i32_0 : i32, i32
  }
}

</mosaic_0001>

<llo_original>
// kernel: tpu_custom_call.1
$region0: #{tpu_custom_call.1}
  #allocation0 [shape = 'u32[]', space=smem, size = 0x4, offset = 0x4, fixed_abs, tag = 'smem constant byte address 0x4 - core index']
  #allocation1 [shape = 'u32[72,128]{1,0:T(1,128)}', space=vmem, size = 0x9000, scoped, tag = 'internal scratch']
  #allocation2 [shape = 'f32[64,384]{1,0:T(8,128)}', space=vmem, size = 0x18000, scoped, tag = 'scratch operand']
  #allocation3 [shape = 'f32[64,128]{1,0:T(8,128)}', space=vmem, size = 0x8000, scoped, tag = 'scratch operand']
  %s0 = inlined_call_operand.hbm [shape: f32[64,128], index: 0, kind: input, shape index: {}]
  %s1 = inlined_call_operand.hbm [shape: f32[2,128,384], index: 1, kind: input, shape index: {}]
  %s2 = inlined_call_operand.hbm [shape: f32[2,128,384], index: 2, kind: input, shape index: {}]
  %s3 = inlined_call_operand.hbm [shape: f32[2,1,384], index: 3, kind: input, shape index: {}]
  %s4 = inlined_call_operand.hbm [shape: f32[2,8,128], index: 4, kind: input, shape index: {}]
  %s5 = inlined_call_operand.hbm [shape: f32[128,128], index: 5, kind: input, shape index: {}]
  %s6 = inlined_call_operand.vmem [shape: f32[1,128], index: 6, kind: input, shape index: {}]
  %s7 = inlined_call_operand.hbm [shape: f32[64,128], index: 7, kind: output, shape index: {}]
  %s8 = sld [smem:[#allocation0]]
  $region93: #{tpu_custom_call.1} parent=0
    _
  %s10 = ssub.s32 1, %s8
  %s11 = scalar_select 0, %s10, %s8
  $region1: #{tpu_custom_call.1} parent=0
    #allocation4 [shape = 'u8[32768]{0}', space=vmem, size = 0x8000, scoped, tag = 'input window, operand 0, single buffered']
    #allocation5 [shape = 's32[2]{0}', space=sflag, size = 0x8, scoped, tag = 'scoped memory for tpu_custom_call.1']
    #allocation6 [shape = 's32[2]{0}', space=sflag, size = 0x8, scoped, tag = 'scoped memory for tpu_custom_call.1']
    #allocation7 [shape = 'u8[393216]{0}', space=vmem, size = 0x60000, scoped, tag = 'input window, operand 1']
    #allocation8 [shape = 's32[2]{0}', space=sflag, size = 0x8, scoped, tag = 'scoped memory for tpu_custom_call.1']
    #allocation9 [shape = 'u8[393216]{0}', space=vmem, size = 0x60000, scoped, tag = 'input window, operand 2']
    #allocation10 [shape = 'u8[3072]{0}', space=vmem, size = 0xc00, scoped, tag = 'input window, operand 3']
    #allocation11 [shape = 's32[2]{0}', space=sflag, size = 0x8, scoped, tag = 'scoped memory for tpu_custom_call.1']
    #allocation12 [shape = 'u8[8192]{0}', space=vmem, size = 0x2000, scoped, tag = 'input window, operand 4']
    #allocation13 [shape = 'u8[65536]{0}', space=vmem, size = 0x10000, scoped, tag = 'input window, operand 5, single buffered']
    #allocation14 [shape = 's32[1]{0}', space=sflag, size = 0x4, scoped, tag = 'scoped memory for tpu_custom_call.1']
    #allocation15 [shape = 'u8[32768]{0}', space=vmem, size = 0x8000, scoped, tag = 'output window, operand 0, single buffered']
    %12 = vsyncpa [#allocation5], 0
    %13 = vsyncpa [#allocation8], 0
    %s14 = scalar_lea.sflag [#allocation8], 1
    %15 = vsyncpa %s14, 0
    %16 = vsyncpa [#allocation11], 0
    %s17 = scalar_lea.sflag [#allocation11], 1
    %18 = vsyncpa %s17, 0
    %19 = vsyncpa [#allocation14], 0
    %20 = vsyncpa [#allocation6], 0
    loop: start=0, step=1, limit=4
    $region2: #{tpu_custom_call.1} parent=1 // loop_pre_header
      _
    $region3: #{tpu_custom_call.1} parent=1 // loop_header
      %s22 = sphi 0, %s26
      %p23 = scmp.ge.s32.totalorder %s22, 4
      %s30 = sphi 0, %s30
      %s32 = sphi 0, %s30
      %s33 = sphi 0, %s32
      %s47 = sphi 0, %s33
      %s53 = sphi 0, %s55
      %s56 = sphi 0, %s53
      %s57 = sphi 0, %s56
      %s73 = sphi 0, %s57
      %s79 = sphi 0, %s81
      %s82 = sphi 0, %s79
      %s83 = sphi 0, %s82
      %s99 = sphi 0, %s83
      %s105 = sphi 0, %s107
      %s108 = sphi 0, %s105
      %s109 = sphi 0, %s108
      %s125 = sphi 0, %s109
      %s131 = sphi 0, %s133
      %s134 = sphi 0, %s131
      %s135 = sphi 0, %s134
      %s151 = sphi 0, %s135
      %s155 = sphi 0, %s155
      %s157 = sphi 0, %s155
      %s158 = sphi 0, %s157
      %s172 = sphi 0, %s158
      %s176 = sphi 0, %s176
      %s178 = sphi 0, %s176
      %s179 = sphi 0, %s178
      %s193 = sphi 0, %s179
      %s197 = sphi 0, %s197
      %s199 = sphi 0, %s197
      %s200 = sphi 0, %s199
      %s214 = sphi 0, %s200
    $region4: #{tpu_custom_call.1} parent=1 // loop_header_branch
      %25 = sbr.rel (%p23) target = $region8
    $region5: #{tpu_custom_call.1} parent=1 // loop_body
      %s27 = ssub.s32 %s22, 1
      %s28 = ssub.s32 %s22, 2
      %s29 = sadd.s32 %s22, 1
      %s31 = sadd.s32 %s30, 1
      %p34 = scmp.eq.s32.totalorder %s22, 1
      %p35 = scmp.ne.s32.totalorder %s30, %s32
      %p36 = scmp.eq.s32.totalorder %s22, 0
      %p37 = por %p35, %p36
      %p38 = scmp.ne.s32.totalorder %s30, %s32
      %p39 = scmp.eq.s32.totalorder %s27, 1
      %p40 = por %p38, %p39
      %p41 = scmp.ne.s32.totalorder %s32, %s33
      %p42 = scmp.eq.s32.totalorder %s27, 0
      %p43 = por %p41, %p42
      %p44 = scmp.ne.s32.totalorder %s32, %s33
      %p45 = scmp.eq.s32.totalorder %s28, 1
      %p46 = por %p44, %p45
      %p48 = scmp.ne.s32.totalorder %s33, %s47
      %p49 = scmp.eq.s32.totalorder %s28, 0
      %p50 = por %p48, %p49
      %s51 = ssub.s32 %s22, %s29
      %p52 = scmp.eq.s32.totalorder %s51, 0
      %s54 = sadd.s32 %s53, 1
      %s55 = scalar_select %p52, %s53, %s54
      %p58 = pneg %p52
      %p59 = scmp.eq.s32.totalorder %s22, 1
      %p60 = por %p58, %p59
      %p61 = scmp.ne.s32.totalorder %s53, %s56
      %p62 = scmp.eq.s32.totalorder %s22, 0
      %p63 = por %p61, %p62
      %p64 = scmp.ne.s32.totalorder %s53, %s56
      %p65 = scmp.eq.s32.totalorder %s27, 1
      %p66 = por %p64, %p65
      %p67 = scmp.ne.s32.totalorder %s56, %s57
      %p68 = scmp.eq.s32.totalorder %s27, 0
      %p69 = por %p67, %p68
      %p70 = scmp.ne.s32.totalorder %s56, %s57
      %p71 = scmp.eq.s32.totalorder %s28, 1
      %p72 = por %p70, %p71
      %p74 = scmp.ne.s32.totalorder %s57, %s73
      %p75 = scmp.eq.s32.totalorder %s28, 0
      %p76 = por %p74, %p75
      %s77 = ssub.s32 %s22, %s29
      %p78 = scmp.eq.s32.totalorder %s77, 0
      %s80 = sadd.s32 %s79, 1
      %s81 = scalar_select %p78, %s79, %s80
      %p84 = pneg %p78
      %p85 = scmp.eq.s32.totalorder %s22, 1
      %p86 = por %p84, %p85
      %p87 = scmp.ne.s32.totalorder %s79, %s82
      %p88 = scmp.eq.s32.totalorder %s22, 0
      %p89 = por %p87, %p88
      %p90 = scmp.ne.s32.totalorder %s79, %s82
      %p91 = scmp.eq.s32.totalorder %s27, 1
      %p92 = por %p90, %p91
      %p93 = scmp.ne.s32.totalorder %s82, %s83
      %p94 = scmp.eq.s32.totalorder %s27, 0
      %p95 = por %p93, %p94
      %p96 = scmp.ne.s32.totalorder %s82, %s83
      %p97 = scmp.eq.s32.totalorder %s28, 1
      %p98 = por %p96, %p97
      %p100 = scmp.ne.s32.totalorder %s83, %s99
      %p101 = scmp.eq.s32.totalorder %s28, 0
      %p102 = por %p100, %p101
      %s103 = ssub.s32 %s22, %s29
      %p104 = scmp.eq.s32.totalorder %s103, 0
      %s106 = sadd.s32 %s105, 1
      %s107 = scalar_select %p104, %s105, %s106
      %p110 = pneg %p104
      %p111 = scmp.eq.s32.totalorder %s22, 1
      %p112 = por %p110, %p111
      %p113 = scmp.ne.s32.totalorder %s105, %s108
      %p114 = scmp.eq.s32.totalorder %s22, 0
      %p115 = por %p113, %p114
      %p116 = scmp.ne.s32.totalorder %s105, %s108
      %p117 = scmp.eq.s32.totalorder %s27, 1
      %p118 = por %p116, %p117
      %p119 = scmp.ne.s32.totalorder %s108, %s109
      %p120 = scmp.eq.s32.totalorder %s27, 0
      %p121 = por %p119, %p120
      %p122 = scmp.ne.s32.totalorder %s108, %s109
      %p123 = scmp.eq.s32.totalorder %s28, 1
      %p124 = por %p122, %p123
      %p126 = scmp.ne.s32.totalorder %s109, %s125
      %p127 = scmp.eq.s32.totalorder %s28, 0
      %p128 = por %p126, %p127
      %s129 = ssub.s32 %s22, %s29
      %p130 = scmp.eq.s32.totalorder %s129, 0
      %s132 = sadd.s32 %s131, 1
      %s133 = scalar_select %p130, %s131, %s132
      %p136 = pneg %p130
      %p137 = scmp.eq.s32.totalorder %s22, 1
      %p138 = por %p136, %p137
      %p139 = scmp.ne.s32.totalorder %s131, %s134
      %p140 = scmp.eq.s32.totalorder %s22, 0
      %p141 = por %p139, %p140
      %p142 = scmp.ne.s32.totalorder %s131, %s134
      %p143 = scmp.eq.s32.totalorder %s27, 1
      %p144 = por %p142, %p143
      %p145 = scmp.ne.s32.totalorder %s134, %s135
      %p146 = scmp.eq.s32.totalorder %s27, 0
      %p147 = por %p145, %p146
      %p148 = scmp.ne.s32.totalorder %s134, %s135
      %p149 = scmp.eq.s32.totalorder %s28, 1
      %p150 = por %p148, %p149
      %p152 = scmp.ne.s32.totalorder %s135, %s151
      %p153 = scmp.eq.s32.totalorder %s28, 0
      %p154 = por %p152, %p153
      %s156 = sadd.s32 %s155, 1
      %p159 = scmp.eq.s32.totalorder %s22, 1
      %p160 = scmp.ne.s32.totalorder %s155, %s157
      %p161 = scmp.eq.s32.totalorder %s22, 0
      %p162 = por %p160, %p161
      %p163 = scmp.ne.s32.totalorder %s155, %s157
      %p164 = scmp.eq.s32.totalorder %s27, 1
      %p165 = por %p163, %p164
      %p166 = scmp.ne.s32.totalorder %s157, %s158
      %p167 = scmp.eq.s32.totalorder %s27, 0
      %p168 = por %p166, %p167
      %p169 = scmp.ne.s32.totalorder %s157, %s158
      %p170 = scmp.eq.s32.totalorder %s28, 1
      %p171 = por %p169, %p170
      %p173 = scmp.ne.s32.totalorder %s158, %s172
      %p174 = scmp.eq.s32.totalorder %s28, 0
      %p175 = por %p173, %p174
      %s177 = sadd.s32 %s176, 1
      %p180 = scmp.eq.s32.totalorder %s22, 1
      %p181 = scmp.ne.s32.totalorder %s176, %s178
      %p182 = scmp.eq.s32.totalorder %s22, 0
      %p183 = por %p181, %p182
      %p184 = scmp.ne.s32.totalorder %s176, %s178
      %p185 = scmp.eq.s32.totalorder %s27, 1
      %p186 = por %p184, %p185
      %p187 = scmp.ne.s32.totalorder %s178, %s179
      %p188 = scmp.eq.s32.totalorder %s27, 0
      %p189 = por %p187, %p188
      %p190 = scmp.ne.s32.totalorder %s178, %s179
      %p191 = scmp.eq.s32.totalorder %s28, 1
      %p192 = por %p190, %p191
      %p194 = scmp.ne.s32.totalorder %s179, %s193
      %p195 = scmp.eq.s32.totalorder %s28, 0
      %p196 = por %p194, %p195
      %s198 = sadd.s32 %s197, 1
      %p201 = scmp.eq.s32.totalorder %s22, 1
      %p202 = scmp.ne.s32.totalorder %s197, %s199
      %p203 = scmp.eq.s32.totalorder %s22, 0
      %p204 = por %p202, %p203
      %p205 = scmp.ne.s32.totalorder %s197, %s199
      %p206 = scmp.eq.s32.totalorder %s27, 1
      %p207 = por %p205, %p206
      %p208 = scmp.ne.s32.totalorder %s199, %s200
      %p209 = scmp.eq.s32.totalorder %s27, 0
      %p210 = por %p208, %p209
      %p211 = scmp.ne.s32.totalorder %s199, %s200
      %p212 = scmp.eq.s32.totalorder %s28, 1
      %p213 = por %p211, %p212
      %p215 = scmp.ne.s32.totalorder %s200, %s214
      %p216 = scmp.eq.s32.totalorder %s28, 0
      %p217 = por %p215, %p216
      %p218 = scmp.le.s32.totalorder 1, %s22
      %p219 = scmp.lt.s32.totalorder %s22, 3
      %p220 = pnand %p218, %p219
      %p221 = pneg %p220
      // Predicated region
      $region9: #{tpu_custom_call.1} parent=5 // pred_check
        _
      $region10: #{tpu_custom_call.1} parent=5 // pred_check_branch
        %223 = sbr.rel (%p220) target = $region12
      $region11: #{tpu_custom_call.1} parent=5 // pred_region
        %s224 = ssub.s32 %s22, 1
        // Predicated region
        $region13: #{tpu_custom_call.1} parent=11 // pred_check
          %p225 = pneg %p43
        $region14: #{tpu_custom_call.1} parent=11 // pred_check_branch
          %227 = sbr.rel (%p225) target = $region16
        $region15: #{tpu_custom_call.1} parent=11 // pred_region
          %229 = vsyncadd [#allocation5], 0
          %s230 = sshll.u32 %s0, 4
          %s231 = int_to_ptr.hbm [resolvable:$true] %s230
          %s232 = sshll.u32 [#allocation4], 4
          %s233 = int_to_ptr.vmem [resolvable:$true] %s232
          %238 = dma.hbm_to_vmem [thread:$0]  %s231, 1024, %s233, [#allocation5], 128, 128, 8
        $region16: #{tpu_custom_call.1} parent=11 // pred_fallthru
          _
        // Predicated region
        $region17: #{tpu_custom_call.1} parent=11 // pred_check
          %p239 = pneg %p168
        $region18: #{tpu_custom_call.1} parent=11 // pred_check_branch
          %241 = sbr.rel (%p239) target = $region20
        $region19: #{tpu_custom_call.1} parent=11 // pred_region
          %243 = vsyncadd [#allocation14], 0
          %s244 = sshll.u32 %s5, 4
          %s245 = int_to_ptr.hbm [resolvable:$true] %s244
          %s246 = sshll.u32 [#allocation13], 4
          %s247 = int_to_ptr.vmem [resolvable:$true] %s246
          %252 = dma.hbm_to_vmem [thread:$0]  %s245, 2048, %s247, [#allocation14], 128, 128, 8
        $region20: #{tpu_custom_call.1} parent=11 // pred_fallthru
          _
        // Predicated region
        $region21: #{tpu_custom_call.1} parent=11 // pred_check
          %p253 = pneg %p189
        $region22: #{tpu_custom_call.1} parent=11 // pred_check_branch
          %255 = sbr.rel (%p253) target = $region24
        $region23: #{tpu_custom_call.1} parent=11 // pred_region
          _
        $region24: #{tpu_custom_call.1} parent=11 // pred_fallthru
          _
      $region12: #{tpu_custom_call.1} parent=5 // pred_fallthru
        _
      %p256 = scmp.lt.s32.totalorder %s22, 2
      // Predicated region
      $region25: #{tpu_custom_call.1} parent=5 // pred_check
        %p257 = pneg %p256
      $region26: #{tpu_custom_call.1} parent=5 // pred_check_branch
        %259 = sbr.rel (%p257) target = $region28
      $region27: #{tpu_custom_call.1} parent=5 // pred_region
        // Predicated region
        $region29: #{tpu_custom_call.1} parent=27 // pred_check
          %p260 = pneg %p63
        $region30: #{tpu_custom_call.1} parent=27 // pred_check_branch
          %262 = sbr.rel (%p260) target = $region32
        $region31: #{tpu_custom_call.1} parent=27 // pred_region
          %s263 = sand.u32 %s22, 1
          %s264 = scalar_lea.sflag [#allocation8], %s263
          %s265 = sand.u32 %s53, 1
          %s266 = smul.addr %s265, 384
          %s267 = scalar_lea.vmem [#allocation7], %s266
          %269 = vsyncadd %s264, 0
          %s270 = smul.addr %s22, 48
          %s271 = smul.addr %s270, 8
          %s272 = scalar_lea.hbm %s1, %s271
          %s273 = sshll.u32 %s272, 4
          %s274 = int_to_ptr.hbm [resolvable:$true] %s273
          %s275 = sshll.u32 %s267, 4
          %s276 = int_to_ptr.vmem [resolvable:$true] %s275
          %281 = dma.hbm_to_vmem [thread:$0]  %s274, 6144, %s276, %s264, 384, 384, 24
        $region32: #{tpu_custom_call.1} parent=27 // pred_fallthru
          _
        // Predicated region
        $region33: #{tpu_custom_call.1} parent=27 // pred_check
          %p282 = pneg %p89
        $region34: #{tpu_custom_call.1} parent=27 // pred_check_branch
          %284 = sbr.rel (%p282) target = $region36
        $region35: #{tpu_custom_call.1} parent=27 // pred_region
          %s285 = sand.u32 %s22, 1
          %s286 = scalar_lea.sflag [#allocation8], %s285
          %s287 = sand.u32 %s79, 1
          %s288 = smul.addr %s287, 384
          %s289 = scalar_lea.vmem [#allocation9], %s288
          %291 = vsyncadd %s286, 0
          %s292 = smul.addr %s22, 48
          %s293 = smul.addr %s292, 8
          %s294 = scalar_lea.hbm %s2, %s293
          %s295 = sshll.u32 %s294, 4
          %s296 = int_to_ptr.hbm [resolvable:$true] %s295
          %s297 = sshll.u32 %s289, 4
          %s298 = int_to_ptr.vmem [resolvable:$true] %s297
          %303 = dma.hbm_to_vmem [thread:$0]  %s296, 6144, %s298, %s286, 384, 384, 24
        $region36: #{tpu_custom_call.1} parent=27 // pred_fallthru
          _
        // Predicated region
        $region37: #{tpu_custom_call.1} parent=27 // pred_check
          %p304 = pneg %p115
        $region38: #{tpu_custom_call.1} parent=27 // pred_check_branch
          %306 = sbr.rel (%p304) target = $region40
        $region39: #{tpu_custom_call.1} parent=27 // pred_region
          %s307 = sand.u32 %s22, 1
          %s308 = scalar_lea.sflag [#allocation11], %s307
          %s309 = sand.u32 %s105, 1
          %s310 = smul.addr %s309, 3
          %s311 = scalar_lea.vmem [#allocation10], %s310
          %313 = vsyncadd %s308, 0
          %s314 = smul.addr %s22, 3
          %s315 = scalar_lea.hbm %s3, %s314
          %s317 = sshll.u32 %s315, 4
          %s318 = int_to_ptr.hbm [resolvable:$true] %s317
          %s319 = sshll.u32 %s311, 4
          %s320 = int_to_ptr.vmem [resolvable:$true] %s319
          %322 = dma.hbm_to_vmem [thread:$0]  %s318, 48, %s320, %s308
        $region40: #{tpu_custom_call.1} parent=27 // pred_fallthru
          _
        // Predicated region
        $region41: #{tpu_custom_call.1} parent=27 // pred_check
          %p323 = pneg %p141
        $region42: #{tpu_custom_call.1} parent=27 // pred_check_branch
          %325 = sbr.rel (%p323) target = $region44
        $region43: #{tpu_custom_call.1} parent=27 // pred_region
          %s326 = sand.u32 %s22, 1
          %s327 = scalar_lea.sflag [#allocation11], %s326
          %s328 = sand.u32 %s131, 1
          %s329 = smul.addr %s328, 8
          %s330 = scalar_lea.vmem [#allocation12], %s329
          %332 = vsyncadd %s327, 0
          %s333 = smul.addr %s22, 8
          %s334 = scalar_lea.hbm %s4, %s333
          %s336 = sshll.u32 %s334, 4
          %s337 = int_to_ptr.hbm [resolvable:$true] %s336
          %s338 = sshll.u32 %s330, 4
          %s339 = int_to_ptr.vmem [resolvable:$true] %s338
          %341 = dma.hbm_to_vmem [thread:$0]  %s337, 128, %s339, %s327
        $region44: #{tpu_custom_call.1} parent=27 // pred_fallthru
          _
      $region28: #{tpu_custom_call.1} parent=5 // pred_fallthru
        _
      %p342 = scmp.le.s32.totalorder 1, %s22
      %p343 = scmp.lt.s32.totalorder %s22, 3
      %p344 = pnand %p342, %p343
      %p345 = pneg %p344
      // Predicated region
      $region45: #{tpu_custom_call.1} parent=5 // pred_check
        _
      $region46: #{tpu_custom_call.1} parent=5 // pred_check_branch
        %347 = sbr.rel (%p344) target = $region48
      $region47: #{tpu_custom_call.1} parent=5 // pred_region
        %s348 = ssub.s32 %s22, 1
        // Predicated region
        $region49: #{tpu_custom_call.1} parent=47 // pred_check
          %p349 = pneg %p43
        $region50: #{tpu_custom_call.1} parent=47 // pred_check_branch
          %351 = sbr.rel (%p349) target = $region52
        $region51: #{tpu_custom_call.1} parent=47 // pred_region
          %353 = dma.done [#allocation5], 1024
        $region52: #{tpu_custom_call.1} parent=47 // pred_fallthru
          _
        %s354 = sand.u32 %s27, 1
        %s355 = scalar_lea.sflag [#allocation8], %s354
        %s356 = sand.u32 %s56, 1
        %s357 = smul.addr %s356, 384
        %s358 = scalar_lea.vmem [#allocation7], %s357
        // Predicated region
        $region53: #{tpu_custom_call.1} parent=47 // pred_check
          %p359 = pneg %p69
        $region54: #{tpu_custom_call.1} parent=47 // pred_check_branch
          %361 = sbr.rel (%p359) target = $region56
        $region55: #{tpu_custom_call.1} parent=47 // pred_region
          %363 = dma.done %s355, 6144
        $region56: #{tpu_custom_call.1} parent=47 // pred_fallthru
          _
        %s364 = sand.u32 %s27, 1
        %s365 = scalar_lea.sflag [#allocation8], %s364
        %s366 = sand.u32 %s82, 1
        %s367 = smul.addr %s366, 384
        %s368 = scalar_lea.vmem [#allocation9], %s367
        // Predicated region
        $region57: #{tpu_custom_call.1} parent=47 // pred_check
          %p369 = pneg %p95
        $region58: #{tpu_custom_call.1} parent=47 // pred_check_branch
          %371 = sbr.rel (%p369) target = $region60
        $region59: #{tpu_custom_call.1} parent=47 // pred_region
          %373 = dma.done %s365, 6144
        $region60: #{tpu_custom_call.1} parent=47 // pred_fallthru
          _
        %s374 = sand.u32 %s27, 1
        %s375 = scalar_lea.sflag [#allocation11], %s374
        %s376 = sand.u32 %s108, 1
        %s377 = smul.addr %s376, 3
        %s378 = scalar_lea.vmem [#allocation10], %s377
        // Predicated region
        $region61: #{tpu_custom_call.1} parent=47 // pred_check
          %p379 = pneg %p121
        $region62: #{tpu_custom_call.1} parent=47 // pred_check_branch
          %381 = sbr.rel (%p379) target = $region64
        $region63: #{tpu_custom_call.1} parent=47 // pred_region
          %383 = dma.done %s375, 48
        $region64: #{tpu_custom_call.1} parent=47 // pred_fallthru
          _
        %s384 = sand.u32 %s27, 1
        %s385 = scalar_lea.sflag [#allocation11], %s384
        %s386 = sand.u32 %s134, 1
        %s387 = smul.addr %s386, 8
        %s388 = scalar_lea.vmem [#allocation12], %s387
        // Predicated region
        $region65: #{tpu_custom_call.1} parent=47 // pred_check
          %p389 = pneg %p147
        $region66: #{tpu_custom_call.1} parent=47 // pred_check_branch
          %391 = sbr.rel (%p389) target = $region68
        $region67: #{tpu_custom_call.1} parent=47 // pred_region
          %393 = dma.done %s385, 128
        $region68: #{tpu_custom_call.1} parent=47 // pred_fallthru
          _
        // Predicated region
        $region69: #{tpu_custom_call.1} parent=47 // pred_check
          %p394 = pneg %p168
        $region70: #{tpu_custom_call.1} parent=47 // pred_check_branch
          %396 = sbr.rel (%p394) target = $region72
        $region71: #{tpu_custom_call.1} parent=47 // pred_region
          %398 = dma.done [#allocation14], 2048
        $region72: #{tpu_custom_call.1} parent=47 // pred_fallthru
          _
        %p399 = pneg %p43
        %p400 = pneg %p40
        %s401 = sand.u32 %s27, 1
        %s402 = scalar_lea.sflag [#allocation8], %s401
        %s403 = sand.u32 %s56, 1
        %s404 = smul.addr %s403, 384
        %s405 = scalar_lea.vmem [#allocation7], %s404
        %p406 = pneg %p69
        %p407 = pneg %p66
        %s408 = sand.u32 %s27, 1
        %s409 = scalar_lea.sflag [#allocation8], %s408
        %s410 = sand.u32 %s82, 1
        %s411 = smul.addr %s410, 384
        %s412 = scalar_lea.vmem [#allocation9], %s411
        %p413 = pneg %p95
        %p414 = pneg %p92
        %s415 = sand.u32 %s27, 1
        %s416 = scalar_lea.sflag [#allocation11], %s415
        %s417 = sand.u32 %s108, 1
        %s418 = smul.addr %s417, 3
        %s419 = scalar_lea.vmem [#allocation10], %s418
        %p420 = pneg %p121
        %p421 = pneg %p118
        %s422 = sand.u32 %s27, 1
        %s423 = scalar_lea.sflag [#allocation11], %s422
        %s424 = sand.u32 %s134, 1
        %s425 = smul.addr %s424, 8
        %s426 = scalar_lea.vmem [#allocation12], %s425
        %p427 = pneg %p147
        %p428 = pneg %p144
        %p429 = pneg %p168
        %p430 = pneg %p165
        %p431 = pneg %p189
        %p432 = pneg %p186
        %p433 = pneg %p210
        %p434 = pneg %p207
        %p435 = scmp.eq.s32.totalorder %s27, 0
        // Predicated region
        $region73: #{tpu_custom_call.1} parent=47 // pred_check
          %p436 = pneg %p435
        $region74: #{tpu_custom_call.1} parent=47 // pred_check_branch
          %438 = sbr.rel (%p436) target = $region76
        $region75: #{tpu_custom_call.1} parent=47 // pred_region
          %v439 = vld [vmem:[#allocation4] sm:$0xff]
          %v440 = vld [vmem:[#allocation4 + $0x8] sm:$0xff]
          %v441 = vld [vmem:[#allocation4 + $0x10] sm:$0xff]
          %v442 = vld [vmem:[#allocation4 + $0x18] sm:$0xff]
          %v443 = vld [vmem:[#allocation4 + $0x20] sm:$0xff]
          %v444 = vld [vmem:[#allocation4 + $0x28] sm:$0xff]
          %v445 = vld [vmem:[#allocation4 + $0x30] sm:$0xff]
          %v446 = vld [vmem:[#allocation4 + $0x38] sm:$0xff]
          %447 = vst [vmem:[#allocation3] sm:$0xff] %v439
          %448 = vst [vmem:[#allocation3 + $0x8] sm:$0xff] %v440
          %449 = vst [vmem:[#allocation3 + $0x10] sm:$0xff] %v441
          %450 = vst [vmem:[#allocation3 + $0x18] sm:$0xff] %v442
          %451 = vst [vmem:[#allocation3 + $0x20] sm:$0xff] %v443
          %452 = vst [vmem:[#allocation3 + $0x28] sm:$0xff] %v444
          %453 = vst [vmem:[#allocation3 + $0x30] sm:$0xff] %v445
          %454 = vst [vmem:[#allocation3 + $0x38] sm:$0xff] %v446
        $region76: #{tpu_custom_call.1} parent=47 // pred_fallthru
          _
        %v455 = vld [vmem:[%s358] sm:$0xff]
        %v456 = vld [vmem:[%s358 + $0x8] sm:$0xff]
        %v457 = vld [vmem:[%s358 + $0x10] sm:$0xff]
        %v458 = vld [vmem:[%s358 + $0x18] sm:$0xff]
        %v459 = vld [vmem:[%s358 + $0x20] sm:$0xff]
        %v460 = vld [vmem:[%s358 + $0x28] sm:$0xff]
        %v461 = vld [vmem:[%s358 + $0x30] sm:$0xff]
        %v462 = vld [vmem:[%s358 + $0x38] sm:$0xff]
        %v463 = vld [vmem:[%s358 + $0x40] sm:$0xff]
        %v464 = vld [vmem:[%s358 + $0x48] sm:$0xff]
        %v465 = vld [vmem:[%s358 + $0x50] sm:$0xff]
        %v466 = vld [vmem:[%s358 + $0x58] sm:$0xff]
        %v467 = vld [vmem:[%s358 + $0x60] sm:$0xff]
        %v468 = vld [vmem:[%s358 + $0x68] sm:$0xff]
        %v469 = vld [vmem:[%s358 + $0x70] sm:$0xff]
        %v470 = vld [vmem:[%s358 + $0x78] sm:$0xff]
        %v471 = vld [vmem:[%s358 + $0x80] sm:$0xff]
        %v472 = vld [vmem:[%s358 + $0x88] sm:$0xff]
        %v473 = vld [vmem:[%s358 + $0x90] sm:$0xff]
        %v474 = vld [vmem:[%s358 + $0x98] sm:$0xff]
        %v475 = vld [vmem:[%s358 + $0xa0] sm:$0xff]
        %v476 = vld [vmem:[%s358 + $0xa8] sm:$0xff]
        %v477 = vld [vmem:[%s358 + $0xb0] sm:$0xff]
        %v478 = vld [vmem:[%s358 + $0xb8] sm:$0xff]
        %v479 = vld [vmem:[%s358 + $0xc0] sm:$0xff]
        %v480 = vld [vmem:[%s358 + $0xc8] sm:$0xff]
        %v481 = vld [vmem:[%s358 + $0xd0] sm:$0xff]
        %v482 = vld [vmem:[%s358 + $0xd8] sm:$0xff]
        %v483 = vld [vmem:[%s358 + $0xe0] sm:$0xff]
        %v484 = vld [vmem:[%s358 + $0xe8] sm:$0xff]
        %v485 = vld [vmem:[%s358 + $0xf0] sm:$0xff]
        %v486 = vld [vmem:[%s358 + $0xf8] sm:$0xff]
        %v487 = vld [vmem:[%s358 + $0x100] sm:$0xff]
        %v488 = vld [vmem:[%s358 + $0x108] sm:$0xff]
        %v489 = vld [vmem:[%s358 + $0x110] sm:$0xff]
        %v490 = vld [vmem:[%s358 + $0x118] sm:$0xff]
        %v491 = vld [vmem:[%s358 + $0x120] sm:$0xff]
        %v492 = vld [vmem:[%s358 + $0x128] sm:$0xff]
        %v493 = vld [vmem:[%s358 + $0x130] sm:$0xff]
        %v494 = vld [vmem:[%s358 + $0x138] sm:$0xff]
        %v495 = vld [vmem:[%s358 + $0x140] sm:$0xff]
        %v496 = vld [vmem:[%s358 + $0x148] sm:$0xff]
        %v497 = vld [vmem:[%s358 + $0x150] sm:$0xff]
        %v498 = vld [vmem:[%s358 + $0x158] sm:$0xff]
        %v499 = vld [vmem:[%s358 + $0x160] sm:$0xff]
        %v500 = vld [vmem:[%s358 + $0x168] sm:$0xff]
        %v501 = vld [vmem:[%s358 + $0x170] sm:$0xff]
        %v502 = vld [vmem:[%s358 + $0x178] sm:$0xff]
        %v503 = vld [vmem:[#allocation3] sm:$0xff]
        %v504 = vld [vmem:[#allocation3 + $0x8] sm:$0xff]
        %v505 = vld [vmem:[#allocation3 + $0x10] sm:$0xff]
        %v506 = vld [vmem:[#allocation3 + $0x18] sm:$0xff]
        %v507 = vld [vmem:[#allocation3 + $0x20] sm:$0xff]
        %v508 = vld [vmem:[#allocation3 + $0x28] sm:$0xff]
        %v509 = vld [vmem:[#allocation3 + $0x30] sm:$0xff]
        %v510 = vld [vmem:[#allocation3 + $0x38] sm:$0xff]
        %v511 = vld [vmem:[%s378] sm:$0x7]
        %v513 = vperm.slane %v511, 0
        %v514 = vperm.slane %v511, 1
        %v515 = vperm.slane %v511, 2
        %519 = vmatpush.msra.mxu0 %v500
        %520 = vmatpush.msra.mxu0 %v497
        %521 = vmatpush.msra.mxu0 %v494
        %522 = vmatpush.msra.mxu0 %v491
        %523 = vmatpush.msra.mxu0 %v488
        %524 = vmatpush.msra.mxu0 %v485
        %525 = vmatpush.msra.mxu0 %v482
        %526 = vmatpush.msra.mxu0 %v479
        %527 = vmatpush.msra.mxu0 %v476
        %528 = vmatpush.msra.mxu0 %v473
        %529 = vmatpush.msra.mxu0 %v470
        %530 = vmatpush.msra.mxu0 %v467
        %531 = vmatpush.msra.mxu0 %v464
        %532 = vmatpush.msra.mxu0 %v461
        %533 = vmatpush.msra.mxu0 %v458
        %534 = vmatpush.msra.mxu0 %v455
        %535 = vmatmul.f32.gmra.mxu0 %v503
        %v536 = vpop.f32.mrf.mxu0
        %v537 = vadd.f32 %v513, %v536
        %538 = vmatmul.f32.gmra.mxu0 %v504
        %v539 = vpop.f32.mrf.mxu0
        %v540 = vadd.f32 %v513, %v539
        %541 = vmatmul.f32.gmra.mxu0 %v505
        %v542 = vpop.f32.mrf.mxu0
        %v543 = vadd.f32 %v513, %v542
        %544 = vmatmul.f32.gmra.mxu0 %v506
        %v545 = vpop.f32.mrf.mxu0
        %v546 = vadd.f32 %v513, %v545
        %547 = vmatmul.f32.gmra.mxu0 %v507
        %v548 = vpop.f32.mrf.mxu0
        %v549 = vadd.f32 %v513, %v548
        %550 = vmatmul.f32.gmra.mxu0 %v508
        %v551 = vpop.f32.mrf.mxu0
        %v552 = vadd.f32 %v513, %v551
        %553 = vmatmul.f32.gmra.mxu0 %v509
        %v554 = vpop.f32.mrf.mxu0
        %v555 = vadd.f32 %v513, %v554
        %556 = vmatmul.f32.gmra.mxu0 %v510
        %v557 = vpop.f32.mrf.mxu0
        %v558 = vadd.f32 %v513, %v557
        %559 = vdwg.mxu0
        %560 = vmatpush.msra.mxu0 %v501
        %561 = vmatpush.msra.mxu0 %v498
        %562 = vmatpush.msra.mxu0 %v495
        %563 = vmatpush.msra.mxu0 %v492
        %564 = vmatpush.msra.mxu0 %v489
        %565 = vmatpush.msra.mxu0 %v486
        %566 = vmatpush.msra.mxu0 %v483
        %567 = vmatpush.msra.mxu0 %v480
        %568 = vmatpush.msra.mxu0 %v477
        %569 = vmatpush.msra.mxu0 %v474
        %570 = vmatpush.msra.mxu0 %v471
        %571 = vmatpush.msra.mxu0 %v468
        %572 = vmatpush.msra.mxu0 %v465
        %573 = vmatpush.msra.mxu0 %v462
        %574 = vmatpush.msra.mxu0 %v459
        %575 = vmatpush.msra.mxu0 %v456
        %576 = vmatmul.f32.gmra.mxu0 %v503
        %v577 = vpop.f32.mrf.mxu0
        %v578 = vadd.f32 %v514, %v577
        %579 = vmatmul.f32.gmra.mxu0 %v504
        %v580 = vpop.f32.mrf.mxu0
        %v581 = vadd.f32 %v514, %v580
        %582 = vmatmul.f32.gmra.mxu0 %v505
        %v583 = vpop.f32.mrf.mxu0
        %v584 = vadd.f32 %v514, %v583
        %585 = vmatmul.f32.gmra.mxu0 %v506
        %v586 = vpop.f32.mrf.mxu0
        %v587 = vadd.f32 %v514, %v586
        %588 = vmatmul.f32.gmra.mxu0 %v507
        %v589 = vpop.f32.mrf.mxu0
        %v590 = vadd.f32 %v514, %v589
        %591 = vmatmul.f32.gmra.mxu0 %v508
        %v592 = vpop.f32.mrf.mxu0
        %v593 = vadd.f32 %v514, %v592
        %594 = vmatmul.f32.gmra.mxu0 %v509
        %v595 = vpop.f32.mrf.mxu0
        %v596 = vadd.f32 %v514, %v595
        %597 = vmatmul.f32.gmra.mxu0 %v510
        %v598 = vpop.f32.mrf.mxu0
        %v599 = vadd.f32 %v514, %v598
        %600 = vdwg.mxu0
        %601 = vmatpush.msra.mxu0 %v502
        %602 = vmatpush.msra.mxu0 %v499
        %603 = vmatpush.msra.mxu0 %v496
        %604 = vmatpush.msra.mxu0 %v493
        %605 = vmatpush.msra.mxu0 %v490
        %606 = vmatpush.msra.mxu0 %v487
        %607 = vmatpush.msra.mxu0 %v484
        %608 = vmatpush.msra.mxu0 %v481
        %609 = vmatpush.msra.mxu0 %v478
        %610 = vmatpush.msra.mxu0 %v475
        %611 = vmatpush.msra.mxu0 %v472
        %612 = vmatpush.msra.mxu0 %v469
        %613 = vmatpush.msra.mxu0 %v466
        %614 = vmatpush.msra.mxu0 %v463
        %615 = vmatpush.msra.mxu0 %v460
        %616 = vmatpush.msra.mxu0 %v457
        %617 = vmatmul.f32.gmra.mxu0 %v503
        %v618 = vpop.f32.mrf.mxu0
        %v619 = vadd.f32 %v515, %v618
        %620 = vmatmul.f32.gmra.mxu0 %v504
        %v621 = vpop.f32.mrf.mxu0
        %v622 = vadd.f32 %v515, %v621
        %623 = vmatmul.f32.gmra.mxu0 %v505
        %v624 = vpop.f32.mrf.mxu0
        %v625 = vadd.f32 %v515, %v624
        %626 = vmatmul.f32.gmra.mxu0 %v506
        %v627 = vpop.f32.mrf.mxu0
        %v628 = vadd.f32 %v515, %v627
        %629 = vmatmul.f32.gmra.mxu0 %v507
        %v630 = vpop.f32.mrf.mxu0
        %v631 = vadd.f32 %v515, %v630
        %632 = vmatmul.f32.gmra.mxu0 %v508
        %v633 = vpop.f32.mrf.mxu0
        %v634 = vadd.f32 %v515, %v633
        %635 = vmatmul.f32.gmra.mxu0 %v509
        %v636 = vpop.f32.mrf.mxu0
        %v637 = vadd.f32 %v515, %v636
        %638 = vmatmul.f32.gmra.mxu0 %v510
        %v639 = vpop.f32.mrf.mxu0
        %v640 = vadd.f32 %v515, %v639
        %641 = vdwg.mxu0
        %642 = vst [vmem:[#allocation2] sm:$0xff] %v537
        %643 = vst [vmem:[#allocation2 + $0x8] sm:$0xff] %v578
        %644 = vst [vmem:[#allocation2 + $0x10] sm:$0xff] %v619
        %645 = vst [vmem:[#allocation2 + $0x18] sm:$0xff] %v540
        %646 = vst [vmem:[#allocation2 + $0x20] sm:$0xff] %v581
        %647 = vst [vmem:[#allocation2 + $0x28] sm:$0xff] %v622
        %648 = vst [vmem:[#allocation2 + $0x30] sm:$0xff] %v543
        %649 = vst [vmem:[#allocation2 + $0x38] sm:$0xff] %v584
        %650 = vst [vmem:[#allocation2 + $0x40] sm:$0xff] %v625
        %651 = vst [vmem:[#allocation2 + $0x48] sm:$0xff] %v546
        %652 = vst [vmem:[#allocation2 + $0x50] sm:$0xff] %v587
        %653 = vst [vmem:[#allocation2 + $0x58] sm:$0xff] %v628
        %654 = vst [vmem:[#allocation2 + $0x60] sm:$0xff] %v549
        %655 = vst [vmem:[#allocation2 + $0x68] sm:$0xff] %v590
        %656 = vst [vmem:[#allocation2 + $0x70] sm:$0xff] %v631
        %657 = vst [vmem:[#allocation2 + $0x78] sm:$0xff] %v552
        %658 = vst [vmem:[#allocation2 + $0x80] sm:$0xff] %v593
        %659 = vst [vmem:[#allocation2 + $0x88] sm:$0xff] %v634
        %660 = vst [vmem:[#allocation2 + $0x90] sm:$0xff] %v555
        %661 = vst [vmem:[#allocation2 + $0x98] sm:$0xff] %v596
        %662 = vst [vmem:[#allocation2 + $0xa0] sm:$0xff] %v637
        %663 = vst [vmem:[#allocation2 + $0xa8] sm:$0xff] %v558
        %664 = vst [vmem:[#allocation2 + $0xb0] sm:$0xff] %v599
        %665 = vst [vmem:[#allocation2 + $0xb8] sm:$0xff] %v640
        %v666 = vld [vmem:[%s368] sm:$0xff]
        %v667 = vld [vmem:[%s368 + $0x8] sm:$0xff]
        %v668 = vld [vmem:[%s368 + $0x10] sm:$0xff]
        %v669 = vld [vmem:[%s368 + $0x18] sm:$0xff]
        %v670 = vld [vmem:[%s368 + $0x20] sm:$0xff]
        %v671 = vld [vmem:[%s368 + $0x28] sm:$0xff]
        %v672 = vld [vmem:[%s368 + $0x30] sm:$0xff]
        %v673 = vld [vmem:[%s368 + $0x38] sm:$0xff]
        %v674 = vld [vmem:[%s368 + $0x40] sm:$0xff]
        %v675 = vld [vmem:[%s368 + $0x48] sm:$0xff]
        %v676 = vld [vmem:[%s368 + $0x50] sm:$0xff]
        %v677 = vld [vmem:[%s368 + $0x58] sm:$0xff]
        %v678 = vld [vmem:[%s368 + $0x60] sm:$0xff]
        %v679 = vld [vmem:[%s368 + $0x68] sm:$0xff]
        %v680 = vld [vmem:[%s368 + $0x70] sm:$0xff]
        %v681 = vld [vmem:[%s368 + $0x78] sm:$0xff]
        %v682 = vld [vmem:[%s368 + $0x80] sm:$0xff]
        %v683 = vld [vmem:[%s368 + $0x88] sm:$0xff]
        %v684 = vld [vmem:[%s368 + $0x90] sm:$0xff]
        %v685 = vld [vmem:[%s368 + $0x98] sm:$0xff]
        %v686 = vld [vmem:[%s368 + $0xa0] sm:$0xff]
        %v687 = vld [vmem:[%s368 + $0xa8] sm:$0xff]
        %v688 = vld [vmem:[%s368 + $0xb0] sm:$0xff]
        %v689 = vld [vmem:[%s368 + $0xb8] sm:$0xff]
        %v690 = vld [vmem:[%s368 + $0xc0] sm:$0xff]
        %v691 = vld [vmem:[%s368 + $0xc8] sm:$0xff]
        %v692 = vld [vmem:[%s368 + $0xd0] sm:$0xff]
        %v693 = vld [vmem:[%s368 + $0xd8] sm:$0xff]
        %v694 = vld [vmem:[%s368 + $0xe0] sm:$0xff]
        %v695 = vld [vmem:[%s368 + $0xe8] sm:$0xff]
        %v696 = vld [vmem:[%s368 + $0xf0] sm:$0xff]
        %v697 = vld [vmem:[%s368 + $0xf8] sm:$0xff]
        %v698 = vld [vmem:[%s368 + $0x100] sm:$0xff]
        %v699 = vld [vmem:[%s368 + $0x108] sm:$0xff]
        %v700 = vld [vmem:[%s368 + $0x110] sm:$0xff]
        %v701 = vld [vmem:[%s368 + $0x118] sm:$0xff]
        %v702 = vld [vmem:[%s368 + $0x120] sm:$0xff]
        %v703 = vld [vmem:[%s368 + $0x128] sm:$0xff]
        %v704 = vld [vmem:[%s368 + $0x130] sm:$0xff]
        %v705 = vld [vmem:[%s368 + $0x138] sm:$0xff]
        %v706 = vld [vmem:[%s368 + $0x140] sm:$0xff]
        %v707 = vld [vmem:[%s368 + $0x148] sm:$0xff]
        %v708 = vld [vmem:[%s368 + $0x150] sm:$0xff]
        %v709 = vld [vmem:[%s368 + $0x158] sm:$0xff]
        %v710 = vld [vmem:[%s368 + $0x160] sm:$0xff]
        %v711 = vld [vmem:[%s368 + $0x168] sm:$0xff]
        %v712 = vld [vmem:[%s368 + $0x170] sm:$0xff]
        %v713 = vld [vmem:[%s368 + $0x178] sm:$0xff]
        %v714 = vld [vmem:[%s388] sm:$0xff]
        %v715 = vld [vmem:[#allocation2] sm:$0xff]
        %v716 = vld [vmem:[#allocation2 + $0x8] sm:$0xff]
        %v717 = vld [vmem:[#allocation2 + $0x10] sm:$0xff]
        %718 = vmatpush.msra.mxu0 %v711
        %719 = vmatpush.msra.mxu0 %v708
        %720 = vmatpush.msra.mxu0 %v705
        %721 = vmatpush.msra.mxu0 %v702
        %722 = vmatpush.msra.mxu0 %v699
        %723 = vmatpush.msra.mxu0 %v696
        %724 = vmatpush.msra.mxu0 %v693
        %725 = vmatpush.msra.mxu0 %v690
        %726 = vmatpush.msra.mxu0 %v687
        %727 = vmatpush.msra.mxu0 %v684
        %728 = vmatpush.msra.mxu0 %v681
        %729 = vmatpush.msra.mxu0 %v678
        %730 = vmatpush.msra.mxu0 %v675
        %731 = vmatpush.msra.mxu0 %v672
        %732 = vmatpush.msra.mxu0 %v669
        %733 = vmatpush.msra.mxu0 %v666
        %734 = vmatmul.f32.gmra.mxu0 0.0
        %v735 = vpop.f32.mrf.mxu0
        %v736 = vadd.f32 0.0, %v735
        %737 = vdwg.mxu0
        %738 = vmatpush.msra.mxu0 %v712
        %739 = vmatpush.msra.mxu0 %v709
        %740 = vmatpush.msra.mxu0 %v706
        %741 = vmatpush.msra.mxu0 %v703
        %742 = vmatpush.msra.mxu0 %v700
        %743 = vmatpush.msra.mxu0 %v697
        %744 = vmatpush.msra.mxu0 %v694
        %745 = vmatpush.msra.mxu0 %v691
        %746 = vmatpush.msra.mxu0 %v688
        %747 = vmatpush.msra.mxu0 %v685
        %748 = vmatpush.msra.mxu0 %v682
        %749 = vmatpush.msra.mxu0 %v679
        %750 = vmatpush.msra.mxu0 %v676
        %751 = vmatpush.msra.mxu0 %v673
        %752 = vmatpush.msra.mxu0 %v670
        %753 = vmatpush.msra.mxu0 %v667
        %754 = vmatmul.f32.gmra.mxu0 0.0
        %v755 = vpop.f32.mrf.mxu0
        %v756 = vadd.f32 0.0, %v755
        %757 = vdwg.mxu0
        %758 = vmatpush.msra.mxu0 %v713
        %759 = vmatpush.msra.mxu0 %v710
        %760 = vmatpush.msra.mxu0 %v707
        %761 = vmatpush.msra.mxu0 %v704
        %762 = vmatpush.msra.mxu0 %v701
        %763 = vmatpush.msra.mxu0 %v698
        %764 = vmatpush.msra.mxu0 %v695
        %765 = vmatpush.msra.mxu0 %v692
        %766 = vmatpush.msra.mxu0 %v689
        %767 = vmatpush.msra.mxu0 %v686
        %768 = vmatpush.msra.mxu0 %v683
        %769 = vmatpush.msra.mxu0 %v680
        %770 = vmatpush.msra.mxu0 %v677
        %771 = vmatpush.msra.mxu0 %v674
        %772 = vmatpush.msra.mxu0 %v671
        %773 = vmatpush.msra.mxu0 %v668
        %774 = vmatmul.f32.gmra.mxu0 0.0
        %v775 = vpop.f32.mrf.mxu0
        %v776 = vadd.f32 0.0, %v775
        %777 = vdwg.mxu0
        %v778 = vadd.f32 %v715, %v736
        %v779 = vadd.f32 %v716, %v756
        %v780 = vxor.u32 %v778, 2147483648
        %v781 = vxor.u32 %v779, 2147483648
        %v782 = vmul.f32 %v780, 1.442695
        %v783 = vpow.pop %v782
        %v784 = vmul.f32 %v781, 1.442695
        %v785 = vpow.pop %v784
        %v786 = vadd.f32 %v783, 1.0
        %v787 = vadd.f32 %v785, 1.0
        %v788 = vrcp.pop %v786
        %v789 = vmul.f32 %v786, %v788
        %v790 = vsub.f32 1.0, %v789
        %v791 = vmul.f32 %v788, %v790
        %v792 = vadd.f32 %v788, %v791
        %vm793 = vweird.f32 %v786
        %vm794 = vweird.f32 %v788
        %vm795 = vmor %vm793, %vm794
        %v796 = vsel %vm795, %v788, %v792
        %v797 = vand.u32 2147483647, %v786
        %vm798 = vcmp.eq.f32.partialorder %v797, 8.507059e+37
        %v799 = vand.u32 %v786, 2147483648
        %v800 = vor.u32 1.1754944e-38, %v799
        %v801 = vsel %vm798, %v800, %v796
        %v802 = vmul.f32 1.0, %v801
        %v803 = vrcp.pop %v787
        %v804 = vmul.f32 %v787, %v803
        %v805 = vsub.f32 1.0, %v804
        %v806 = vmul.f32 %v803, %v805
        %v807 = vadd.f32 %v803, %v806
        %vm808 = vweird.f32 %v787
        %vm809 = vweird.f32 %v803
        %vm810 = vmor %vm808, %vm809
        %v811 = vsel %vm810, %v803, %v807
        %v812 = vand.u32 2147483647, %v787
        %vm813 = vcmp.eq.f32.partialorder %v812, 8.507059e+37
        %v814 = vand.u32 %v787, 2147483648
        %v815 = vor.u32 1.1754944e-38, %v814
        %v816 = vsel %vm813, %v815, %v811
        %v817 = vmul.f32 1.0, %v816
        %v818 = vadd.f32 %v776, %v714
        %v819 = vmul.f32 %v802, %v818
        %v820 = vadd.f32 %v717, %v819
        %v821 = vtanh.pop %v820
        %v822 = vsub.f32 1.0, %v817
        %v823 = vmul.f32 %v822, %v821
        %v824 = vmul.f32 %v817, 0.0
        %v825 = vadd.f32 %v823, %v824
        %826 = vst [vmem:[#allocation3] sm:$0xff] %v825
        %v827 = vld [vmem:[#allocation2 + $0x18] sm:$0xff]
        %v828 = vld [vmem:[#allocation2 + $0x20] sm:$0xff]
        %v829 = vld [vmem:[#allocation2 + $0x28] sm:$0xff]
        %830 = vmatpush.msra.mxu0 %v711
        %831 = vmatpush.msra.mxu0 %v708
        %832 = vmatpush.msra.mxu0 %v705
        %833 = vmatpush.msra.mxu0 %v702
        %834 = vmatpush.msra.mxu0 %v699
        %835 = vmatpush.msra.mxu0 %v696
        %836 = vmatpush.msra.mxu0 %v693
        %837 = vmatpush.msra.mxu0 %v690
        %838 = vmatpush.msra.mxu0 %v687
        %839 = vmatpush.msra.mxu0 %v684
        %840 = vmatpush.msra.mxu0 %v681
        %841 = vmatpush.msra.mxu0 %v678
        %842 = vmatpush.msra.mxu0 %v675
        %843 = vmatpush.msra.mxu0 %v672
        %844 = vmatpush.msra.mxu0 %v669
        %845 = vmatpush.msra.mxu0 %v666
        %846 = vmatmul.f32.gmra.mxu0 %v825
        %v847 = vpop.f32.mrf.mxu0
        %v848 = vadd.f32 0.0, %v847
        %849 = vdwg.mxu0
        %850 = vmatpush.msra.mxu0 %v712
        %851 = vmatpush.msra.mxu0 %v709
        %852 = vmatpush.msra.mxu0 %v706
        %853 = vmatpush.msra.mxu0 %v703
        %854 = vmatpush.msra.mxu0 %v700
        %855 = vmatpush.msra.mxu0 %v697
        %856 = vmatpush.msra.mxu0 %v694
        %857 = vmatpush.msra.mxu0 %v691
        %858 = vmatpush.msra.mxu0 %v688
        %859 = vmatpush.msra.mxu0 %v685
        %860 = vmatpush.msra.mxu0 %v682
        %861 = vmatpush.msra.mxu0 %v679
        %862 = vmatpush.msra.mxu0 %v676
        %863 = vmatpush.msra.mxu0 %v673
        %864 = vmatpush.msra.mxu0 %v670
        %865 = vmatpush.msra.mxu0 %v667
        %866 = vmatmul.f32.gmra.mxu0 %v825
        %v867 = vpop.f32.mrf.mxu0
        %v868 = vadd.f32 0.0, %v867
        %869 = vdwg.mxu0
        %870 = vmatpush.msra.mxu0 %v713
        %871 = vmatpush.msra.mxu0 %v710
        %872 = vmatpush.msra.mxu0 %v707
        %873 = vmatpush.msra.mxu0 %v704
        %874 = vmatpush.msra.mxu0 %v701
        %875 = vmatpush.msra.mxu0 %v698
        %876 = vmatpush.msra.mxu0 %v695
        %877 = vmatpush.msra.mxu0 %v692
        %878 = vmatpush.msra.mxu0 %v689
        %879 = vmatpush.msra.mxu0 %v686
        %880 = vmatpush.msra.mxu0 %v683
        %881 = vmatpush.msra.mxu0 %v680
        %882 = vmatpush.msra.mxu0 %v677
        %883 = vmatpush.msra.mxu0 %v674
        %884 = vmatpush.msra.mxu0 %v671
        %885 = vmatpush.msra.mxu0 %v668
        %886 = vmatmul.f32.gmra.mxu0 %v825
        %v887 = vpop.f32.mrf.mxu0
        %v888 = vadd.f32 0.0, %v887
        %889 = vdwg.mxu0
        %v890 = vadd.f32 %v827, %v848
        %v891 = vadd.f32 %v828, %v868
        %v892 = vxor.u32 %v890, 2147483648
        %v893 = vxor.u32 %v891, 2147483648
        %v894 = vmul.f32 %v892, 1.442695
        %v895 = vpow.pop %v894
        %v896 = vmul.f32 %v893, 1.442695
        %v897 = vpow.pop %v896
        %v898 = vadd.f32 %v895, 1.0
        %v899 = vadd.f32 %v897, 1.0
        %v900 = vrcp.pop %v898
        %v901 = vmul.f32 %v898, %v900
        %v902 = vsub.f32 1.0, %v901
        %v903 = vmul.f32 %v900, %v902
        %v904 = vadd.f32 %v900, %v903
        %vm905 = vweird.f32 %v898
        %vm906 = vweird.f32 %v900
        %vm907 = vmor %vm905, %vm906
        %v908 = vsel %vm907, %v900, %v904
        %v909 = vand.u32 2147483647, %v898
        %vm910 = vcmp.eq.f32.partialorder %v909, 8.507059e+37
        %v911 = vand.u32 %v898, 2147483648
        %v912 = vor.u32 1.1754944e-38, %v911
        %v913 = vsel %vm910, %v912, %v908
        %v914 = vmul.f32 1.0, %v913
        %v915 = vrcp.pop %v899
        %v916 = vmul.f32 %v899, %v915
        %v917 = vsub.f32 1.0, %v916
        %v918 = vmul.f32 %v915, %v917
        %v919 = vadd.f32 %v915, %v918
        %vm920 = vweird.f32 %v899
        %vm921 = vweird.f32 %v915
        %vm922 = vmor %vm920, %vm921
        %v923 = vsel %vm922, %v915, %v919
        %v924 = vand.u32 2147483647, %v899
        %vm925 = vcmp.eq.f32.partialorder %v924, 8.507059e+37
        %v926 = vand.u32 %v899, 2147483648
        %v927 = vor.u32 1.1754944e-38, %v926
        %v928 = vsel %vm925, %v927, %v923
        %v929 = vmul.f32 1.0, %v928
        %v930 = vadd.f32 %v888, %v714
        %v931 = vmul.f32 %v914, %v930
        %v932 = vadd.f32 %v829, %v931
        %v933 = vtanh.pop %v932
        %v934 = vsub.f32 1.0, %v929
        %v935 = vmul.f32 %v934, %v933
        %v936 = vmul.f32 %v929, %v825
        %v937 = vadd.f32 %v935, %v936
        %938 = vst [vmem:[#allocation3 + $0x8] sm:$0xff] %v937
        %v939 = vld [vmem:[#allocation2 + $0x30] sm:$0xff]
        %v940 = vld [vmem:[#allocation2 + $0x38] sm:$0xff]
        %v941 = vld [vmem:[#allocation2 + $0x40] sm:$0xff]
        %942 = vmatpush.msra.mxu0 %v711
        %943 = vmatpush.msra.mxu0 %v708
        %944 = vmatpush.msra.mxu0 %v705
        %945 = vmatpush.msra.mxu0 %v702
        %946 = vmatpush.msra.mxu0 %v699
        %947 = vmatpush.msra.mxu0 %v696
        %948 = vmatpush.msra.mxu0 %v693
        %949 = vmatpush.msra.mxu0 %v690
        %950 = vmatpush.msra.mxu0 %v687
        %951 = vmatpush.msra.mxu0 %v684
        %952 = vmatpush.msra.mxu0 %v681
        %953 = vmatpush.msra.mxu0 %v678
        %954 = vmatpush.msra.mxu0 %v675
        %955 = vmatpush.msra.mxu0 %v672
        %956 = vmatpush.msra.mxu0 %v669
        %957 = vmatpush.msra.mxu0 %v666
        %958 = vmatmul.f32.gmra.mxu0 %v937
        %v959 = vpop.f32.mrf.mxu0
        %v960 = vadd.f32 0.0, %v959
        %961 = vdwg.mxu0
        %962 = vmatpush.msra.mxu0 %v712
        %963 = vmatpush.msra.mxu0 %v709
        %964 = vmatpush.msra.mxu0 %v706
        %965 = vmatpush.msra.mxu0 %v703
        %966 = vmatpush.msra.mxu0 %v700
        %967 = vmatpush.msra.mxu0 %v697
        %968 = vmatpush.msra.mxu0 %v694
        %969 = vmatpush.msra.mxu0 %v691
        %970 = vmatpush.msra.mxu0 %v688
        %971 = vmatpush.msra.mxu0 %v685
        %972 = vmatpush.msra.mxu0 %v682
        %973 = vmatpush.msra.mxu0 %v679
        %974 = vmatpush.msra.mxu0 %v676
        %975 = vmatpush.msra.mxu0 %v673
        %976 = vmatpush.msra.mxu0 %v670
        %977 = vmatpush.msra.mxu0 %v667
        %978 = vmatmul.f32.gmra.mxu0 %v937
        %v979 = vpop.f32.mrf.mxu0
        %v980 = vadd.f32 0.0, %v979
        %981 = vdwg.mxu0
        %982 = vmatpush.msra.mxu0 %v713
        %983 = vmatpush.msra.mxu0 %v710
        %984 = vmatpush.msra.mxu0 %v707
        %985 = vmatpush.msra.mxu0 %v704
        %986 = vmatpush.msra.mxu0 %v701
        %987 = vmatpush.msra.mxu0 %v698
        %988 = vmatpush.msra.mxu0 %v695
        %989 = vmatpush.msra.mxu0 %v692
        %990 = vmatpush.msra.mxu0 %v689
        %991 = vmatpush.msra.mxu0 %v686
        %992 = vmatpush.msra.mxu0 %v683
        %993 = vmatpush.msra.mxu0 %v680
        %994 = vmatpush.msra.mxu0 %v677
        %995 = vmatpush.msra.mxu0 %v674
        %996 = vmatpush.msra.mxu0 %v671
        %997 = vmatpush.msra.mxu0 %v668
        %998 = vmatmul.f32.gmra.mxu0 %v937
        %v999 = vpop.f32.mrf.mxu0
        %v1000 = vadd.f32 0.0, %v999
        %1001 = vdwg.mxu0
        %v1002 = vadd.f32 %v939, %v960
        %v1003 = vadd.f32 %v940, %v980
        %v1004 = vxor.u32 %v1002, 2147483648
        %v1005 = vxor.u32 %v1003, 2147483648
        %v1006 = vmul.f32 %v1004, 1.442695
        %v1007 = vpow.pop %v1006
        %v1008 = vmul.f32 %v1005, 1.442695
        %v1009 = vpow.pop %v1008
        %v1010 = vadd.f32 %v1007, 1.0
        %v1011 = vadd.f32 %v1009, 1.0
        %v1012 = vrcp.pop %v1010
        %v1013 = vmul.f32 %v1010, %v1012
        %v1014 = vsub.f32 1.0, %v1013
        %v1015 = vmul.f32 %v1012, %v1014
        %v1016 = vadd.f32 %v1012, %v1015
        %vm1017 = vweird.f32 %v1010
        %vm1018 = vweird.f32 %v1012
        %vm1019 = vmor %vm1017, %vm1018
        %v1020 = vsel %vm1019, %v1012, %v1016
        %v1021 = vand.u32 2147483647, %v1010
        %vm1022 = vcmp.eq.f32.partialorder %v1021, 8.507059e+37
        %v1023 = vand.u32 %v1010, 2147483648
        %v1024 = vor.u32 1.1754944e-38, %v1023
        %v1025 = vsel %vm1022, %v1024, %v1020
        %v1026 = vmul.f32 1.0, %v1025
        %v1027 = vrcp.pop %v1011
        %v1028 = vmul.f32 %v1011, %v1027
        %v1029 = vsub.f32 1.0, %v1028
        %v1030 = vmul.f32 %v1027, %v1029
        %v1031 = vadd.f32 %v1027, %v1030
        %vm1032 = vweird.f32 %v1011
        %vm1033 = vweird.f32 %v1027
        %vm1034 = vmor %vm1032, %vm1033
        %v1035 = vsel %vm1034, %v1027, %v1031
        %v1036 = vand.u32 2147483647, %v1011
        %vm1037 = vcmp.eq.f32.partialorder %v1036, 8.507059e+37
        %v1038 = vand.u32 %v1011, 2147483648
        %v1039 = vor.u32 1.1754944e-38, %v1038
        %v1040 = vsel %vm1037, %v1039, %v1035
        %v1041 = vmul.f32 1.0, %v1040
        %v1042 = vadd.f32 %v1000, %v714
        %v1043 = vmul.f32 %v1026, %v1042
        %v1044 = vadd.f32 %v941, %v1043
        %v1045 = vtanh.pop %v1044
        %v1046 = vsub.f32 1.0, %v1041
        %v1047 = vmul.f32 %v1046, %v1045
        %v1048 = vmul.f32 %v1041, %v937
        %v1049 = vadd.f32 %v1047, %v1048
        %1050 = vst [vmem:[#allocation3 + $0x10] sm:$0xff] %v1049
        %v1051 = vld [vmem:[#allocation2 + $0x48] sm:$0xff]
        %v1052 = vld [vmem:[#allocation2 + $0x50] sm:$0xff]
        %v1053 = vld [vmem:[#allocation2 + $0x58] sm:$0xff]
        %1054 = vmatpush.msra.mxu0 %v711
        %1055 = vmatpush.msra.mxu0 %v708
        %1056 = vmatpush.msra.mxu0 %v705
        %1057 = vmatpush.msra.mxu0 %v702
        %1058 = vmatpush.msra.mxu0 %v699
        %1059 = vmatpush.msra.mxu0 %v696
        %1060 = vmatpush.msra.mxu0 %v693
        %1061 = vmatpush.msra.mxu0 %v690
        %1062 = vmatpush.msra.mxu0 %v687
        %1063 = vmatpush.msra.mxu0 %v684
        %1064 = vmatpush.msra.mxu0 %v681
        %1065 = vmatpush.msra.mxu0 %v678
        %1066 = vmatpush.msra.mxu0 %v675
        %1067 = vmatpush.msra.mxu0 %v672
        %1068 = vmatpush.msra.mxu0 %v669
        %1069 = vmatpush.msra.mxu0 %v666
        %1070 = vmatmul.f32.gmra.mxu0 %v1049
        %v1071 = vpop.f32.mrf.mxu0
        %v1072 = vadd.f32 0.0, %v1071
        %1073 = vdwg.mxu0
        %1074 = vmatpush.msra.mxu0 %v712
        %1075 = vmatpush.msra.mxu0 %v709
        %1076 = vmatpush.msra.mxu0 %v706
        %1077 = vmatpush.msra.mxu0 %v703
        %1078 = vmatpush.msra.mxu0 %v700
        %1079 = vmatpush.msra.mxu0 %v697
        %1080 = vmatpush.msra.mxu0 %v694
        %1081 = vmatpush.msra.mxu0 %v691
        %1082 = vmatpush.msra.mxu0 %v688
        %1083 = vmatpush.msra.mxu0 %v685
        %1084 = vmatpush.msra.mxu0 %v682
        %1085 = vmatpush.msra.mxu0 %v679
        %1086 = vmatpush.msra.mxu0 %v676
        %1087 = vmatpush.msra.mxu0 %v673
        %1088 = vmatpush.msra.mxu0 %v670
        %1089 = vmatpush.msra.mxu0 %v667
        %1090 = vmatmul.f32.gmra.mxu0 %v1049
        %v1091 = vpop.f32.mrf.mxu0
        %v1092 = vadd.f32 0.0, %v1091
        %1093 = vdwg.mxu0
        %1094 = vmatpush.msra.mxu0 %v713
        %1095 = vmatpush.msra.mxu0 %v710
        %1096 = vmatpush.msra.mxu0 %v707
        %1097 = vmatpush.msra.mxu0 %v704
        %1098 = vmatpush.msra.mxu0 %v701
        %1099 = vmatpush.msra.mxu0 %v698
        %1100 = vmatpush.msra.mxu0 %v695
        %1101 = vmatpush.msra.mxu0 %v692
        %1102 = vmatpush.msra.mxu0 %v689
        %1103 = vmatpush.msra.mxu0 %v686
        %1104 = vmatpush.msra.mxu0 %v683
        %1105 = vmatpush.msra.mxu0 %v680
        %1106 = vmatpush.msra.mxu0 %v677
        %1107 = vmatpush.msra.mxu0 %v674
        %1108 = vmatpush.msra.mxu0 %v671
        %1109 = vmatpush.msra.mxu0 %v668
        %1110 = vmatmul.f32.gmra.mxu0 %v1049
        %v1111 = vpop.f32.mrf.mxu0
        %v1112 = vadd.f32 0.0, %v1111
        %1113 = vdwg.mxu0
        %v1114 = vadd.f32 %v1051, %v1072
        %v1115 = vadd.f32 %v1052, %v1092
        %v1116 = vxor.u32 %v1114, 2147483648
        %v1117 = vxor.u32 %v1115, 2147483648
        %v1118 = vmul.f32 %v1116, 1.442695
        %v1119 = vpow.pop %v1118
        %v1120 = vmul.f32 %v1117, 1.442695
        %v1121 = vpow.pop %v1120
        %v1122 = vadd.f32 %v1119, 1.0
        %v1123 = vadd.f32 %v1121, 1.0
        %v1124 = vrcp.pop %v1122
        %v1125 = vmul.f32 %v1122, %v1124
        %v1126 = vsub.f32 1.0, %v1125
        %v1127 = vmul.f32 %v1124, %v1126
        %v1128 = vadd.f32 %v1124, %v1127
        %vm1129 = vweird.f32 %v1122
        %vm1130 = vweird.f32 %v1124
        %vm1131 = vmor %vm1129, %vm1130
        %v1132 = vsel %vm1131, %v1124, %v1128
        %v1133 = vand.u32 2147483647, %v1122
        %vm1134 = vcmp.eq.f32.partialorder %v1133, 8.507059e+37
        %v1135 = vand.u32 %v1122, 2147483648
        %v1136 = vor.u32 1.1754944e-38, %v1135
        %v1137 = vsel %vm1134, %v1136, %v1132
        %v1138 = vmul.f32 1.0, %v1137
        %v1139 = vrcp.pop %v1123
        %v1140 = vmul.f32 %v1123, %v1139
        %v1141 = vsub.f32 1.0, %v1140
        %v1142 = vmul.f32 %v1139, %v1141
        %v1143 = vadd.f32 %v1139, %v1142
        %vm1144 = vweird.f32 %v1123
        %vm1145 = vweird.f32 %v1139
        %vm1146 = vmor %vm1144, %vm1145
        %v1147 = vsel %vm1146, %v1139, %v1143
        %v1148 = vand.u32 2147483647, %v1123
        %vm1149 = vcmp.eq.f32.partialorder %v1148, 8.507059e+37
        %v1150 = vand.u32 %v1123, 2147483648
        %v1151 = vor.u32 1.1754944e-38, %v1150
        %v1152 = vsel %vm1149, %v1151, %v1147
        %v1153 = vmul.f32 1.0, %v1152
        %v1154 = vadd.f32 %v1112, %v714
        %v1155 = vmul.f32 %v1138, %v1154
        %v1156 = vadd.f32 %v1053, %v1155
        %v1157 = vtanh.pop %v1156
        %v1158 = vsub.f32 1.0, %v1153
        %v1159 = vmul.f32 %v1158, %v1157
        %v1160 = vmul.f32 %v1153, %v1049
        %v1161 = vadd.f32 %v1159, %v1160
        %1162 = vst [vmem:[#allocation3 + $0x18] sm:$0xff] %v1161
        %v1163 = vld [vmem:[#allocation2 + $0x60] sm:$0xff]
        %v1164 = vld [vmem:[#allocation2 + $0x68] sm:$0xff]
        %v1165 = vld [vmem:[#allocation2 + $0x70] sm:$0xff]
        %1166 = vmatpush.msra.mxu0 %v711
        %1167 = vmatpush.msra.mxu0 %v708
        %1168 = vmatpush.msra.mxu0 %v705
        %1169 = vmatpush.msra.mxu0 %v702
        %1170 = vmatpush.msra.mxu0 %v699
        %1171 = vmatpush.msra.mxu0 %v696
        %1172 = vmatpush.msra.mxu0 %v693
        %1173 = vmatpush.msra.mxu0 %v690
        %1174 = vmatpush.msra.mxu0 %v687
        %1175 = vmatpush.msra.mxu0 %v684
        %1176 = vmatpush.msra.mxu0 %v681
        %1177 = vmatpush.msra.mxu0 %v678
        %1178 = vmatpush.msra.mxu0 %v675
        %1179 = vmatpush.msra.mxu0 %v672
        %1180 = vmatpush.msra.mxu0 %v669
        %1181 = vmatpush.msra.mxu0 %v666
        %1182 = vmatmul.f32.gmra.mxu0 %v1161
        %v1183 = vpop.f32.mrf.mxu0
        %v1184 = vadd.f32 0.0, %v1183
        %1185 = vdwg.mxu0
        %1186 = vmatpush.msra.mxu0 %v712
        %1187 = vmatpush.msra.mxu0 %v709
        %1188 = vmatpush.msra.mxu0 %v706
        %1189 = vmatpush.msra.mxu0 %v703
        %1190 = vmatpush.msra.mxu0 %v700
        %1191 = vmatpush.msra.mxu0 %v697
        %1192 = vmatpush.msra.mxu0 %v694
        %1193 = vmatpush.msra.mxu0 %v691
        %1194 = vmatpush.msra.mxu0 %v688
        %1195 = vmatpush.msra.mxu0 %v685
        %1196 = vmatpush.msra.mxu0 %v682
        %1197 = vmatpush.msra.mxu0 %v679
        %1198 = vmatpush.msra.mxu0 %v676
        %1199 = vmatpush.msra.mxu0 %v673
        %1200 = vmatpush.msra.mxu0 %v670
        %1201 = vmatpush.msra.mxu0 %v667
        %1202 = vmatmul.f32.gmra.mxu0 %v1161
        %v1203 = vpop.f32.mrf.mxu0
        %v1204 = vadd.f32 0.0, %v1203
        %1205 = vdwg.mxu0
        %1206 = vmatpush.msra.mxu0 %v713
        %1207 = vmatpush.msra.mxu0 %v710
        %1208 = vmatpush.msra.mxu0 %v707
        %1209 = vmatpush.msra.mxu0 %v704
        %1210 = vmatpush.msra.mxu0 %v701
        %1211 = vmatpush.msra.mxu0 %v698
        %1212 = vmatpush.msra.mxu0 %v695
        %1213 = vmatpush.msra.mxu0 %v692
        %1214 = vmatpush.msra.mxu0 %v689
        %1215 = vmatpush.msra.mxu0 %v686
        %1216 = vmatpush.msra.mxu0 %v683
        %1217 = vmatpush.msra.mxu0 %v680
        %1218 = vmatpush.msra.mxu0 %v677
        %1219 = vmatpush.msra.mxu0 %v674
        %1220 = vmatpush.msra.mxu0 %v671
        %1221 = vmatpush.msra.mxu0 %v668
        %1222 = vmatmul.f32.gmra.mxu0 %v1161
        %v1223 = vpop.f32.mrf.mxu0
        %v1224 = vadd.f32 0.0, %v1223
        %1225 = vdwg.mxu0
        %v1226 = vadd.f32 %v1163, %v1184
        %v1227 = vadd.f32 %v1164, %v1204
        %v1228 = vxor.u32 %v1226, 2147483648
        %v1229 = vxor.u32 %v1227, 2147483648
        %v1230 = vmul.f32 %v1228, 1.442695
        %v1231 = vpow.pop %v1230
        %v1232 = vmul.f32 %v1229, 1.442695
        %v1233 = vpow.pop %v1232
        %v1234 = vadd.f32 %v1231, 1.0
        %v1235 = vadd.f32 %v1233, 1.0
        %v1236 = vrcp.pop %v1234
        %v1237 = vmul.f32 %v1234, %v1236
        %v1238 = vsub.f32 1.0, %v1237
        %v1239 = vmul.f32 %v1236, %v1238
        %v1240 = vadd.f32 %v1236, %v1239
        %vm1241 = vweird.f32 %v1234
        %vm1242 = vweird.f32 %v1236
        %vm1243 = vmor %vm1241, %vm1242
        %v1244 = vsel %vm1243, %v1236, %v1240
        %v1245 = vand.u32 2147483647, %v1234
        %vm1246 = vcmp.eq.f32.partialorder %v1245, 8.507059e+37
        %v1247 = vand.u32 %v1234, 2147483648
        %v1248 = vor.u32 1.1754944e-38, %v1247
        %v1249 = vsel %vm1246, %v1248, %v1244
        %v1250 = vmul.f32 1.0, %v1249
        %v1251 = vrcp.pop %v1235
        %v1252 = vmul.f32 %v1235, %v1251
        %v1253 = vsub.f32 1.0, %v1252
        %v1254 = vmul.f32 %v1251, %v1253
        %v1255 = vadd.f32 %v1251, %v1254
        %vm1256 = vweird.f32 %v1235
        %vm1257 = vweird.f32 %v1251
        %vm1258 = vmor %vm1256, %vm1257
        %v1259 = vsel %vm1258, %v1251, %v1255
        %v1260 = vand.u32 2147483647, %v1235
        %vm1261 = vcmp.eq.f32.partialorder %v1260, 8.507059e+37
        %v1262 = vand.u32 %v1235, 2147483648
        %v1263 = vor.u32 1.1754944e-38, %v1262
        %v1264 = vsel %vm1261, %v1263, %v1259
        %v1265 = vmul.f32 1.0, %v1264
        %v1266 = vadd.f32 %v1224, %v714
        %v1267 = vmul.f32 %v1250, %v1266
        %v1268 = vadd.f32 %v1165, %v1267
        %v1269 = vtanh.pop %v1268
        %v1270 = vsub.f32 1.0, %v1265
        %v1271 = vmul.f32 %v1270, %v1269
        %v1272 = vmul.f32 %v1265, %v1161
        %v1273 = vadd.f32 %v1271, %v1272
        %1274 = vst [vmem:[#allocation3 + $0x20] sm:$0xff] %v1273
        %v1275 = vld [vmem:[#allocation2 + $0x78] sm:$0xff]
        %v1276 = vld [vmem:[#allocation2 + $0x80] sm:$0xff]
        %v1277 = vld [vmem:[#allocation2 + $0x88] sm:$0xff]
        %1278 = vmatpush.msra.mxu0 %v711
        %1279 = vmatpush.msra.mxu0 %v708
        %1280 = vmatpush.msra.mxu0 %v705
        %1281 = vmatpush.msra.mxu0 %v702
        %1282 = vmatpush.msra.mxu0 %v699
        %1283 = vmatpush.msra.mxu0 %v696
        %1284 = vmatpush.msra.mxu0 %v693
        %1285 = vmatpush.msra.mxu0 %v690
        %1286 = vmatpush.msra.mxu0 %v687
        %1287 = vmatpush.msra.mxu0 %v684
        %1288 = vmatpush.msra.mxu0 %v681
        %1289 = vmatpush.msra.mxu0 %v678
        %1290 = vmatpush.msra.mxu0 %v675
        %1291 = vmatpush.msra.mxu0 %v672
        %1292 = vmatpush.msra.mxu0 %v669
        %1293 = vmatpush.msra.mxu0 %v666
        %1294 = vmatmul.f32.gmra.mxu0 %v1273
        %v1295 = vpop.f32.mrf.mxu0
        %v1296 = vadd.f32 0.0, %v1295
        %1297 = vdwg.mxu0
        %1298 = vmatpush.msra.mxu0 %v712
        %1299 = vmatpush.msra.mxu0 %v709
        %1300 = vmatpush.msra.mxu0 %v706
        %1301 = vmatpush.msra.mxu0 %v703
        %1302 = vmatpush.msra.mxu0 %v700
        %1303 = vmatpush.msra.mxu0 %v697
        %1304 = vmatpush.msra.mxu0 %v694
        %1305 = vmatpush.msra.mxu0 %v691
        %1306 = vmatpush.msra.mxu0 %v688
        %1307 = vmatpush.msra.mxu0 %v685
        %1308 = vmatpush.msra.mxu0 %v682
        %1309 = vmatpush.msra.mxu0 %v679
        %1310 = vmatpush.msra.mxu0 %v676
        %1311 = vmatpush.msra.mxu0 %v673
        %1312 = vmatpush.msra.mxu0 %v670
        %1313 = vmatpush.msra.mxu0 %v667
        %1314 = vmatmul.f32.gmra.mxu0 %v1273
        %v1315 = vpop.f32.mrf.mxu0
        %v1316 = vadd.f32 0.0, %v1315
        %1317 = vdwg.mxu0
        %1318 = vmatpush.msra.mxu0 %v713
        %1319 = vmatpush.msra.mxu0 %v710
        %1320 = vmatpush.msra.mxu0 %v707
        %1321 = vmatpush.msra.mxu0 %v704
        %1322 = vmatpush.msra.mxu0 %v701
        %1323 = vmatpush.msra.mxu0 %v698
        %1324 = vmatpush.msra.mxu0 %v695
        %1325 = vmatpush.msra.mxu0 %v692
        %1326 = vmatpush.msra.mxu0 %v689
        %1327 = vmatpush.msra.mxu0 %v686
        %1328 = vmatpush.msra.mxu0 %v683
        %1329 = vmatpush.msra.mxu0 %v680
        %1330 = vmatpush.msra.mxu0 %v677
        %1331 = vmatpush.msra.mxu0 %v674
        %1332 = vmatpush.msra.mxu0 %v671
        %1333 = vmatpush.msra.mxu0 %v668
        %1334 = vmatmul.f32.gmra.mxu0 %v1273
        %v1335 = vpop.f32.mrf.mxu0
        %v1336 = vadd.f32 0.0, %v1335
        %1337 = vdwg.mxu0
        %v1338 = vadd.f32 %v1275, %v1296
        %v1339 = vadd.f32 %v1276, %v1316
        %v1340 = vxor.u32 %v1338, 2147483648
        %v1341 = vxor.u32 %v1339, 2147483648
        %v1342 = vmul.f32 %v1340, 1.442695
        %v1343 = vpow.pop %v1342
        %v1344 = vmul.f32 %v1341, 1.442695
        %v1345 = vpow.pop %v1344
        %v1346 = vadd.f32 %v1343, 1.0
        %v1347 = vadd.f32 %v1345, 1.0
        %v1348 = vrcp.pop %v1346
        %v1349 = vmul.f32 %v1346, %v1348
        %v1350 = vsub.f32 1.0, %v1349
        %v1351 = vmul.f32 %v1348, %v1350
        %v1352 = vadd.f32 %v1348, %v1351
        %vm1353 = vweird.f32 %v1346
        %vm1354 = vweird.f32 %v1348
        %vm1355 = vmor %vm1353, %vm1354
        %v1356 = vsel %vm1355, %v1348, %v1352
        %v1357 = vand.u32 2147483647, %v1346
        %vm1358 = vcmp.eq.f32.partialorder %v1357, 8.507059e+37
        %v1359 = vand.u32 %v1346, 2147483648
        %v1360 = vor.u32 1.1754944e-38, %v1359
        %v1361 = vsel %vm1358, %v1360, %v1356
        %v1362 = vmul.f32 1.0, %v1361
        %v1363 = vrcp.pop %v1347
        %v1364 = vmul.f32 %v1347, %v1363
        %v1365 = vsub.f32 1.0, %v1364
        %v1366 = vmul.f32 %v1363, %v1365
        %v1367 = vadd.f32 %v1363, %v1366
        %vm1368 = vweird.f32 %v1347
        %vm1369 = vweird.f32 %v1363
        %vm1370 = vmor %vm1368, %vm1369
        %v1371 = vsel %vm1370, %v1363, %v1367
        %v1372 = vand.u32 2147483647, %v1347
        %vm1373 = vcmp.eq.f32.partialorder %v1372, 8.507059e+37
        %v1374 = vand.u32 %v1347, 2147483648
        %v1375 = vor.u32 1.1754944e-38, %v1374
        %v1376 = vsel %vm1373, %v1375, %v1371
        %v1377 = vmul.f32 1.0, %v1376
        %v1378 = vadd.f32 %v1336, %v714
        %v1379 = vmul.f32 %v1362, %v1378
        %v1380 = vadd.f32 %v1277, %v1379
        %v1381 = vtanh.pop %v1380
        %v1382 = vsub.f32 1.0, %v1377
        %v1383 = vmul.f32 %v1382, %v1381
        %v1384 = vmul.f32 %v1377, %v1273
        %v1385 = vadd.f32 %v1383, %v1384
        %1386 = vst [vmem:[#allocation3 + $0x28] sm:$0xff] %v1385
        %v1387 = vld [vmem:[#allocation2 + $0x90] sm:$0xff]
        %v1388 = vld [vmem:[#allocation2 + $0x98] sm:$0xff]
        %v1389 = vld [vmem:[#allocation2 + $0xa0] sm:$0xff]
        %1390 = vmatpush.msra.mxu0 %v711
        %1391 = vmatpush.msra.mxu0 %v708
        %1392 = vmatpush.msra.mxu0 %v705
        %1393 = vmatpush.msra.mxu0 %v702
        %1394 = vmatpush.msra.mxu0 %v699
        %1395 = vmatpush.msra.mxu0 %v696
        %1396 = vmatpush.msra.mxu0 %v693
        %1397 = vmatpush.msra.mxu0 %v690
        %1398 = vmatpush.msra.mxu0 %v687
        %1399 = vmatpush.msra.mxu0 %v684
        %1400 = vmatpush.msra.mxu0 %v681
        %1401 = vmatpush.msra.mxu0 %v678
        %1402 = vmatpush.msra.mxu0 %v675
        %1403 = vmatpush.msra.mxu0 %v672
        %1404 = vmatpush.msra.mxu0 %v669
        %1405 = vmatpush.msra.mxu0 %v666
        %1406 = vmatmul.f32.gmra.mxu0 %v1385
        %v1407 = vpop.f32.mrf.mxu0
        %v1408 = vadd.f32 0.0, %v1407
        %1409 = vdwg.mxu0
        %1410 = vmatpush.msra.mxu0 %v712
        %1411 = vmatpush.msra.mxu0 %v709
        %1412 = vmatpush.msra.mxu0 %v706
        %1413 = vmatpush.msra.mxu0 %v703
        %1414 = vmatpush.msra.mxu0 %v700
        %1415 = vmatpush.msra.mxu0 %v697
        %1416 = vmatpush.msra.mxu0 %v694
        %1417 = vmatpush.msra.mxu0 %v691
        %1418 = vmatpush.msra.mxu0 %v688
        %1419 = vmatpush.msra.mxu0 %v685
        %1420 = vmatpush.msra.mxu0 %v682
        %1421 = vmatpush.msra.mxu0 %v679
        %1422 = vmatpush.msra.mxu0 %v676
        %1423 = vmatpush.msra.mxu0 %v673
        %1424 = vmatpush.msra.mxu0 %v670
        %1425 = vmatpush.msra.mxu0 %v667
        %1426 = vmatmul.f32.gmra.mxu0 %v1385
        %v1427 = vpop.f32.mrf.mxu0
        %v1428 = vadd.f32 0.0, %v1427
        %1429 = vdwg.mxu0
        %1430 = vmatpush.msra.mxu0 %v713
        %1431 = vmatpush.msra.mxu0 %v710
        %1432 = vmatpush.msra.mxu0 %v707
        %1433 = vmatpush.msra.mxu0 %v704
        %1434 = vmatpush.msra.mxu0 %v701
        %1435 = vmatpush.msra.mxu0 %v698
        %1436 = vmatpush.msra.mxu0 %v695
        %1437 = vmatpush.msra.mxu0 %v692
        %1438 = vmatpush.msra.mxu0 %v689
        %1439 = vmatpush.msra.mxu0 %v686
        %1440 = vmatpush.msra.mxu0 %v683
        %1441 = vmatpush.msra.mxu0 %v680
        %1442 = vmatpush.msra.mxu0 %v677
        %1443 = vmatpush.msra.mxu0 %v674
        %1444 = vmatpush.msra.mxu0 %v671
        %1445 = vmatpush.msra.mxu0 %v668
        %1446 = vmatmul.f32.gmra.mxu0 %v1385
        %v1447 = vpop.f32.mrf.mxu0
        %v1448 = vadd.f32 0.0, %v1447
        %1449 = vdwg.mxu0
        %v1450 = vadd.f32 %v1387, %v1408
        %v1451 = vadd.f32 %v1388, %v1428
        %v1452 = vxor.u32 %v1450, 2147483648
        %v1453 = vxor.u32 %v1451, 2147483648
        %v1454 = vmul.f32 %v1452, 1.442695
        %v1455 = vpow.pop %v1454
        %v1456 = vmul.f32 %v1453, 1.442695
        %v1457 = vpow.pop %v1456
        %v1458 = vadd.f32 %v1455, 1.0
        %v1459 = vadd.f32 %v1457, 1.0
        %v1460 = vrcp.pop %v1458
        %v1461 = vmul.f32 %v1458, %v1460
        %v1462 = vsub.f32 1.0, %v1461
        %v1463 = vmul.f32 %v1460, %v1462
        %v1464 = vadd.f32 %v1460, %v1463
        %vm1465 = vweird.f32 %v1458
        %vm1466 = vweird.f32 %v1460
        %vm1467 = vmor %vm1465, %vm1466
        %v1468 = vsel %vm1467, %v1460, %v1464
        %v1469 = vand.u32 2147483647, %v1458
        %vm1470 = vcmp.eq.f32.partialorder %v1469, 8.507059e+37
        %v1471 = vand.u32 %v1458, 2147483648
        %v1472 = vor.u32 1.1754944e-38, %v1471
        %v1473 = vsel %vm1470, %v1472, %v1468
        %v1474 = vmul.f32 1.0, %v1473
        %v1475 = vrcp.pop %v1459
        %v1476 = vmul.f32 %v1459, %v1475
        %v1477 = vsub.f32 1.0, %v1476
        %v1478 = vmul.f32 %v1475, %v1477
        %v1479 = vadd.f32 %v1475, %v1478
        %vm1480 = vweird.f32 %v1459
        %vm1481 = vweird.f32 %v1475
        %vm1482 = vmor %vm1480, %vm1481
        %v1483 = vsel %vm1482, %v1475, %v1479
        %v1484 = vand.u32 2147483647, %v1459
        %vm1485 = vcmp.eq.f32.partialorder %v1484, 8.507059e+37
        %v1486 = vand.u32 %v1459, 2147483648
        %v1487 = vor.u32 1.1754944e-38, %v1486
        %v1488 = vsel %vm1485, %v1487, %v1483
        %v1489 = vmul.f32 1.0, %v1488
        %v1490 = vadd.f32 %v1448, %v714
        %v1491 = vmul.f32 %v1474, %v1490
        %v1492 = vadd.f32 %v1389, %v1491
        %v1493 = vtanh.pop %v1492
        %v1494 = vsub.f32 1.0, %v1489
        %v1495 = vmul.f32 %v1494, %v1493
        %v1496 = vmul.f32 %v1489, %v1385
        %v1497 = vadd.f32 %v1495, %v1496
        %1498 = vst [vmem:[#allocation3 + $0x30] sm:$0xff] %v1497
        %v1499 = vld [vmem:[#allocation2 + $0xa8] sm:$0xff]
        %v1500 = vld [vmem:[#allocation2 + $0xb0] sm:$0xff]
        %v1501 = vld [vmem:[#allocation2 + $0xb8] sm:$0xff]
        %1502 = vmatpush.msra.mxu0 %v711
        %1503 = vmatpush.msra.mxu0 %v708
        %1504 = vmatpush.msra.mxu0 %v705
        %1505 = vmatpush.msra.mxu0 %v702
        %1506 = vmatpush.msra.mxu0 %v699
        %1507 = vmatpush.msra.mxu0 %v696
        %1508 = vmatpush.msra.mxu0 %v693
        %1509 = vmatpush.msra.mxu0 %v690
        %1510 = vmatpush.msra.mxu0 %v687
        %1511 = vmatpush.msra.mxu0 %v684
        %1512 = vmatpush.msra.mxu0 %v681
        %1513 = vmatpush.msra.mxu0 %v678
        %1514 = vmatpush.msra.mxu0 %v675
        %1515 = vmatpush.msra.mxu0 %v672
        %1516 = vmatpush.msra.mxu0 %v669
        %1517 = vmatpush.msra.mxu0 %v666
        %1518 = vmatmul.f32.gmra.mxu0 %v1497
        %v1519 = vpop.f32.mrf.mxu0
        %v1520 = vadd.f32 0.0, %v1519
        %1521 = vdwg.mxu0
        %1522 = vmatpush.msra.mxu0 %v712
        %1523 = vmatpush.msra.mxu0 %v709
        %1524 = vmatpush.msra.mxu0 %v706
        %1525 = vmatpush.msra.mxu0 %v703
        %1526 = vmatpush.msra.mxu0 %v700
        %1527 = vmatpush.msra.mxu0 %v697
        %1528 = vmatpush.msra.mxu0 %v694
        %1529 = vmatpush.msra.mxu0 %v691
        %1530 = vmatpush.msra.mxu0 %v688
        %1531 = vmatpush.msra.mxu0 %v685
        %1532 = vmatpush.msra.mxu0 %v682
        %1533 = vmatpush.msra.mxu0 %v679
        %1534 = vmatpush.msra.mxu0 %v676
        %1535 = vmatpush.msra.mxu0 %v673
        %1536 = vmatpush.msra.mxu0 %v670
        %1537 = vmatpush.msra.mxu0 %v667
        %1538 = vmatmul.f32.gmra.mxu0 %v1497
        %v1539 = vpop.f32.mrf.mxu0
        %v1540 = vadd.f32 0.0, %v1539
        %1541 = vdwg.mxu0
        %1542 = vmatpush.msra.mxu0 %v713
        %1543 = vmatpush.msra.mxu0 %v710
        %1544 = vmatpush.msra.mxu0 %v707
        %1545 = vmatpush.msra.mxu0 %v704
        %1546 = vmatpush.msra.mxu0 %v701
        %1547 = vmatpush.msra.mxu0 %v698
        %1548 = vmatpush.msra.mxu0 %v695
        %1549 = vmatpush.msra.mxu0 %v692
        %1550 = vmatpush.msra.mxu0 %v689
        %1551 = vmatpush.msra.mxu0 %v686
        %1552 = vmatpush.msra.mxu0 %v683
        %1553 = vmatpush.msra.mxu0 %v680
        %1554 = vmatpush.msra.mxu0 %v677
        %1555 = vmatpush.msra.mxu0 %v674
        %1556 = vmatpush.msra.mxu0 %v671
        %1557 = vmatpush.msra.mxu0 %v668
        %1558 = vmatmul.f32.gmra.mxu0 %v1497
        %v1559 = vpop.f32.mrf.mxu0
        %v1560 = vadd.f32 0.0, %v1559
        %1561 = vdwg.mxu0
        %v1562 = vadd.f32 %v1499, %v1520
        %v1563 = vadd.f32 %v1500, %v1540
        %v1564 = vxor.u32 %v1562, 2147483648
        %v1565 = vxor.u32 %v1563, 2147483648
        %v1566 = vmul.f32 %v1564, 1.442695
        %v1567 = vpow.pop %v1566
        %v1568 = vmul.f32 %v1565, 1.442695
        %v1569 = vpow.pop %v1568
        %v1570 = vadd.f32 %v1567, 1.0
        %v1571 = vadd.f32 %v1569, 1.0
        %v1572 = vrcp.pop %v1570
        %v1573 = vmul.f32 %v1570, %v1572
        %v1574 = vsub.f32 1.0, %v1573
        %v1575 = vmul.f32 %v1572, %v1574
        %v1576 = vadd.f32 %v1572, %v1575
        %vm1577 = vweird.f32 %v1570
        %vm1578 = vweird.f32 %v1572
        %vm1579 = vmor %vm1577, %vm1578
        %v1580 = vsel %vm1579, %v1572, %v1576
        %v1581 = vand.u32 2147483647, %v1570
        %vm1582 = vcmp.eq.f32.partialorder %v1581, 8.507059e+37
        %v1583 = vand.u32 %v1570, 2147483648
        %v1584 = vor.u32 1.1754944e-38, %v1583
        %v1585 = vsel %vm1582, %v1584, %v1580
        %v1586 = vmul.f32 1.0, %v1585
        %v1587 = vrcp.pop %v1571
        %v1588 = vmul.f32 %v1571, %v1587
        %v1589 = vsub.f32 1.0, %v1588
        %v1590 = vmul.f32 %v1587, %v1589
        %v1591 = vadd.f32 %v1587, %v1590
        %vm1592 = vweird.f32 %v1571
        %vm1593 = vweird.f32 %v1587
        %vm1594 = vmor %vm1592, %vm1593
        %v1595 = vsel %vm1594, %v1587, %v1591
        %v1596 = vand.u32 2147483647, %v1571
        %vm1597 = vcmp.eq.f32.partialorder %v1596, 8.507059e+37
        %v1598 = vand.u32 %v1571, 2147483648
        %v1599 = vor.u32 1.1754944e-38, %v1598
        %v1600 = vsel %vm1597, %v1599, %v1595
        %v1601 = vmul.f32 1.0, %v1600
        %v1602 = vadd.f32 %v1560, %v714
        %v1603 = vmul.f32 %v1586, %v1602
        %v1604 = vadd.f32 %v1501, %v1603
        %v1605 = vtanh.pop %v1604
        %v1606 = vsub.f32 1.0, %v1601
        %v1607 = vmul.f32 %v1606, %v1605
        %v1608 = vmul.f32 %v1601, %v1497
        %v1609 = vadd.f32 %v1607, %v1608
        %1610 = vst [vmem:[#allocation3 + $0x38] sm:$0xff] %v1609
        %p1611 = scmp.eq.s32.totalorder %s27, 1
        // Predicated region
        $region77: #{tpu_custom_call.1} parent=47 // pred_check
          %p1612 = pneg %p1611
        $region78: #{tpu_custom_call.1} parent=47 // pred_check_branch
          %1614 = sbr.rel (%p1612) target = $region80
        $region79: #{tpu_custom_call.1} parent=47 // pred_region
          %v1615 = vld [vmem:[#allocation3] sm:$0xff]
          %v1616 = vld [vmem:[#allocation3 + $0x8] sm:$0xff]
          %v1617 = vld [vmem:[#allocation3 + $0x10] sm:$0xff]
          %v1618 = vld [vmem:[#allocation3 + $0x18] sm:$0xff]
          %v1619 = vld [vmem:[#allocation3 + $0x20] sm:$0xff]
          %v1620 = vld [vmem:[#allocation3 + $0x28] sm:$0xff]
          %v1621 = vld [vmem:[#allocation3 + $0x30] sm:$0xff]
          %v1622 = vld [vmem:[#allocation3 + $0x38] sm:$0xff]
          %v1623 = vld [vmem:[#allocation13] sm:$0xff]
          %v1624 = vld [vmem:[#allocation13 + $0x8] sm:$0xff]
          %v1625 = vld [vmem:[#allocation13 + $0x10] sm:$0xff]
          %v1626 = vld [vmem:[#allocation13 + $0x18] sm:$0xff]
          %v1627 = vld [vmem:[#allocation13 + $0x20] sm:$0xff]
          %v1628 = vld [vmem:[#allocation13 + $0x28] sm:$0xff]
          %v1629 = vld [vmem:[#allocation13 + $0x30] sm:$0xff]
          %v1630 = vld [vmem:[#allocation13 + $0x38] sm:$0xff]
          %v1631 = vld [vmem:[#allocation13 + $0x40] sm:$0xff]
          %v1632 = vld [vmem:[#allocation13 + $0x48] sm:$0xff]
          %v1633 = vld [vmem:[#allocation13 + $0x50] sm:$0xff]
          %v1634 = vld [vmem:[#allocation13 + $0x58] sm:$0xff]
          %v1635 = vld [vmem:[#allocation13 + $0x60] sm:$0xff]
          %v1636 = vld [vmem:[#allocation13 + $0x68] sm:$0xff]
          %v1637 = vld [vmem:[#allocation13 + $0x70] sm:$0xff]
          %v1638 = vld [vmem:[#allocation13 + $0x78] sm:$0xff]
          %v1639 = vld [vmem:[%s6] sm:$0x1]
          %v1641 = vperm.slane %v1639, 0
          %1643 = vmatpush.msra.mxu0 %v1638
          %1644 = vmatpush.msra.mxu0 %v1637
          %1645 = vmatpush.msra.mxu0 %v1636
          %1646 = vmatpush.msra.mxu0 %v1635
          %1647 = vmatpush.msra.mxu0 %v1634
          %1648 = vmatpush.msra.mxu0 %v1633
          %1649 = vmatpush.msra.mxu0 %v1632
          %1650 = vmatpush.msra.mxu0 %v1631
          %1651 = vmatpush.msra.mxu0 %v1630
          %1652 = vmatpush.msra.mxu0 %v1629
          %1653 = vmatpush.msra.mxu0 %v1628
          %1654 = vmatpush.msra.mxu0 %v1627
          %1655 = vmatpush.msra.mxu0 %v1626
          %1656 = vmatpush.msra.mxu0 %v1625
          %1657 = vmatpush.msra.mxu0 %v1624
          %1658 = vmatpush.msra.mxu0 %v1623
          %1659 = vmatmul.f32.gmra.mxu0 %v1615
          %v1660 = vpop.f32.mrf.mxu0
          %v1661 = vadd.f32 %v1641, %v1660
          %1662 = vmatmul.f32.gmra.mxu0 %v1616
          %v1663 = vpop.f32.mrf.mxu0
          %v1664 = vadd.f32 %v1641, %v1663
          %1665 = vmatmul.f32.gmra.mxu0 %v1617
          %v1666 = vpop.f32.mrf.mxu0
          %v1667 = vadd.f32 %v1641, %v1666
          %1668 = vmatmul.f32.gmra.mxu0 %v1618
          %v1669 = vpop.f32.mrf.mxu0
          %v1670 = vadd.f32 %v1641, %v1669
          %1671 = vmatmul.f32.gmra.mxu0 %v1619
          %v1672 = vpop.f32.mrf.mxu0
          %v1673 = vadd.f32 %v1641, %v1672
          %1674 = vmatmul.f32.gmra.mxu0 %v1620
          %v1675 = vpop.f32.mrf.mxu0
          %v1676 = vadd.f32 %v1641, %v1675
          %1677 = vmatmul.f32.gmra.mxu0 %v1621
          %v1678 = vpop.f32.mrf.mxu0
          %v1679 = vadd.f32 %v1641, %v1678
          %1680 = vmatmul.f32.gmra.mxu0 %v1622
          %v1681 = vpop.f32.mrf.mxu0
          %v1682 = vadd.f32 %v1641, %v1681
          %1683 = vdwg.mxu0
          %1684 = vst [vmem:[#allocation15] sm:$0xff] %v1661
          %1685 = vst [vmem:[#allocation15 + $0x8] sm:$0xff] %v1664
          %1686 = vst [vmem:[#allocation15 + $0x10] sm:$0xff] %v1667
          %1687 = vst [vmem:[#allocation15 + $0x18] sm:$0xff] %v1670
          %1688 = vst [vmem:[#allocation15 + $0x20] sm:$0xff] %v1673
          %1689 = vst [vmem:[#allocation15 + $0x28] sm:$0xff] %v1676
          %1690 = vst [vmem:[#allocation15 + $0x30] sm:$0xff] %v1679
          %1691 = vst [vmem:[#allocation15 + $0x38] sm:$0xff] %v1682
        $region80: #{tpu_custom_call.1} parent=47 // pred_fallthru
          _
        // Predicated region
        $region81: #{tpu_custom_call.1} parent=47 // pred_check
          %p1692 = pneg %p207
        $region82: #{tpu_custom_call.1} parent=47 // pred_check_branch
          %1694 = sbr.rel (%p1692) target = $region84
        $region83: #{tpu_custom_call.1} parent=47 // pred_region
          %1696 = vsyncadd [#allocation6], 0
          %s1697 = sshll.u32 [#allocation15], 4
          %s1698 = int_to_ptr.vmem [resolvable:$true] %s1697
          %s1699 = sshll.u32 %s7, 4
          %s1700 = int_to_ptr.hbm [resolvable:$true] %s1699
          %1705 = dma.vmem_to_hbm [thread:$0]  %s1698, 1024, %s1700, [#allocation6], 128, 128, 8
        $region84: #{tpu_custom_call.1} parent=47 // pred_fallthru
          _
        // Predicated region
        $region85: #{tpu_custom_call.1} parent=47 // pred_check
          %p1706 = pneg %p207
        $region86: #{tpu_custom_call.1} parent=47 // pred_check_branch
          %1708 = sbr.rel (%p1706) target = $region88
        $region87: #{tpu_custom_call.1} parent=47 // pred_region
          %1710 = dma.done [#allocation6], 1024
        $region88: #{tpu_custom_call.1} parent=47 // pred_fallthru
          _
      $region48: #{tpu_custom_call.1} parent=5 // pred_fallthru
        _
      %p1711 = scmp.le.s32.totalorder 2, %s22
      // Predicated region
      $region89: #{tpu_custom_call.1} parent=5 // pred_check
        %p1712 = pneg %p1711
      $region90: #{tpu_custom_call.1} parent=5 // pred_check_branch
        %1714 = sbr.rel (%p1712) target = $region92
      $region91: #{tpu_custom_call.1} parent=5 // pred_region
        %s1715 = ssub.s32 %s22, 2
      $region92: #{tpu_custom_call.1} parent=5 // pred_fallthru
        _
    $region6: #{tpu_custom_call.1} parent=1 // loop_footer
      %s26 = sadd.s32 1, %s22
    $region7: #{tpu_custom_call.1} parent=1 // loop_footer_branch
      %21 = sbr.rel target = $region3
    $region8: #{tpu_custom_call.1} parent=1 // loop_exit
      _
    %1716 = vsyncpa [#allocation5], 1
    %s1717 = scalar_lea.sflag [#allocation5], 1
    %1718 = vsyncpa %s1717, 1
    %1719 = vsyncpa [#allocation8], 1
    %s1720 = scalar_lea.sflag [#allocation8], 1
    %1721 = vsyncpa %s1720, 1
    %1722 = vsyncpa [#allocation11], 1
    %s1723 = scalar_lea.sflag [#allocation11], 1
    %1724 = vsyncpa %s1723, 1
    %1725 = vsyncpa [#allocation14], 1
    %1726 = vsyncpa [#allocation6], 1
    %s1727 = scalar_lea.sflag [#allocation6], 1
    %1728 = vsyncpa %s1727, 1

</llo_original>
